<compile_context>
chip_gen: v6e
topology: v6e:2x2x1
jax: 0.10.0
libtpu: 0.0.40
codegen_flags: <defaults>
</compile_context>

<pallas_src>
import jax
import jax.numpy as jnp
from jax import lax
from jax.experimental import pallas as pl
from jax.experimental.pallas import tpu as pltpu

_LANE = 128


def conv_relu_pool_kernel(x_ref, w_ref, b_ref, o_ref, xp_ref):
    """One image per grid step.

    x_ref : (1, H, W, Cin)        -- unpadded NHWC input tile
    w_ref : (9*Cin, Cp)           -- HWIO weights flattened over (kh, kw, cin), Cout padded to Cp
    b_ref : (1, Cp)               -- bias, Cout padded to Cp
    o_ref : (1, H//2, W//2, Cp)   -- pooled output (lane-dense last dim)
    xp_ref: (H+2, W+2, Cin)       -- VMEM scratch holding the zero-padded image
    """
    H, W, Cin = x_ref.shape[1], x_ref.shape[2], x_ref.shape[3]
    Cp = o_ref.shape[3]
    Ho, Wo = H // 2, W // 2

    # ---- in-kernel zero padding (halo) into VMEM scratch ------------------
    # (re-zeroed every step so correctness does not depend on which core ran step 0)
    xp_ref[...] = jnp.zeros_like(xp_ref)
    xp_ref[1:H + 1, 1:W + 1, :] = x_ref[0]
    xp = xp_ref[...]                                    # (H+2, W+2, Cin)

    # ---- im2col: one (H*W, 9*Cin) patch tensor -> single MXU matmul -------
    # column order (kh, kw, cin) matches the wrapper's weight flattening.
    cols = [xp[kh:kh + H, kw:kw + W, :] for kh in range(3) for kw in range(3)]
    patches = jnp.concatenate(cols, axis=-1)            # (H, W, 9*Cin)
    patches = patches.reshape(H * W, 9 * Cin)

    acc = jnp.dot(patches, w_ref[...],
                  preferred_element_type=jnp.float32)   # (H*W, Cp), f32 acc

    # ---- bias + ReLU (single VPU pass) -------------------------------------
    y = jnp.maximum(acc + b_ref[...], 0.0)              # (H*W, Cp)

    # ---- 2x2 / stride-2 max pool via pairwise maxima (stays on the VPU) ----
    y = y.reshape(H * Wo, 2, Cp)
    y = jnp.maximum(y[:, 0, :], y[:, 1, :])             # pool along W -> (H*Wo, Cp)
    y = y.reshape(Ho, 2, Wo, Cp)
    y = jnp.maximum(y[:, 0], y[:, 1])                   # pool along H -> (Ho, Wo, Cp)

    # lane-dense store (last dim Cp is a multiple of 128 -> unmasked vst)
    o_ref[0] = y.astype(o_ref.dtype)


def conv_relu_pool(x_nchw, w_oihw, bias):
    """Matches ConvReLUPool.forward: maxpool2(relu(conv3x3_pad1(x)))."""
    N, Cin, H, W = x_nchw.shape
    Cout = w_oihw.shape[0]
    assert H % 2 == 0 and W % 2 == 0
    Cp = pl.cdiv(Cout, _LANE) * _LANE                   # lane-dense padded channel count

    # Layout glue (cheap, weights-only pads; no full-input jnp.pad pass).
    x_nhwc = jnp.transpose(x_nchw, (0, 2, 3, 1))                         # NCHW -> NHWC
    w_flat = jnp.transpose(w_oihw, (2, 3, 1, 0)).reshape(9 * Cin, Cout)  # OIHW -> HWIO -> (9*Cin, Cout)
    w_flat = jnp.pad(w_flat, ((0, 0), (0, Cp - Cout)))
    b_pad = jnp.pad(bias.reshape(1, Cout), ((0, 0), (0, Cp - Cout)))

    out_nhwc = pl.pallas_call(
        conv_relu_pool_kernel,
        out_shape=jax.ShapeDtypeStruct((N, H // 2, W // 2, Cp), x_nchw.dtype),
        grid_spec=pltpu.PrefetchScalarGridSpec(
            num_scalar_prefetch=0,
            grid=(N,),
            in_specs=[
                pl.BlockSpec((1, H, W, Cin), lambda n: (n, 0, 0, 0)),
                pl.BlockSpec((9 * Cin, Cp), lambda n: (0, 0)),
                pl.BlockSpec((1, Cp), lambda n: (0, 0)),
            ],
            out_specs=pl.BlockSpec((1, H // 2, W // 2, Cp),
                                   lambda n: (n, 0, 0, 0)),
            scratch_shapes=[pltpu.VMEM((H + 2, W + 2, Cin), x_nchw.dtype)],
        ),
        compiler_params=pltpu.CompilerParams(dimension_semantics=("parallel",)),
    )(x_nhwc, w_flat, b_pad)

    # drop padded channels, NHWC -> NCHW to match the PyTorch module
    return jnp.transpose(out_nhwc[..., :Cout], (0, 3, 1, 2))


def _reference(x_nchw, w_oihw, bias):
    """Pure-JAX reference of the PyTorch forward, for correctness check."""
    x_nhwc = jnp.transpose(x_nchw, (0, 2, 3, 1))
    w_hwio = jnp.transpose(w_oihw, (2, 3, 1, 0))
    y = lax.conv_general_dilated(
        x_nhwc, w_hwio, window_strides=(1, 1), padding="SAME",
        dimension_numbers=("NHWC", "HWIO", "NHWC"))
    y = y + bias.reshape(1, 1, 1, -1)
    y = jnp.maximum(y, 0.0)
    y = lax.reduce_window(y, -jnp.inf, lax.max,
                          window_dimensions=(1, 2, 2, 1),
                          window_strides=(1, 2, 2, 1), padding="VALID")
    return jnp.transpose(y, (0, 3, 1, 2))


if __name__ == "__main__":
    # ConvReLUPool(in_channels=4, out_channels=8) on x: (2, 4, 16, 16)
    N, Cin, Cout, H, W = 2, 4, 8, 16, 16

    key = jax.random.PRNGKey(0)
    kx, kw, kb = jax.random.split(key, 3)

    x = jax.random.normal(kx, (N, Cin, H, W), dtype=jnp.float32)
    # Deterministic "kaiming-ish" init (shapes from nn.Conv2d(Cin, Cout, 3, padding=1))
    fan_in = Cin * 3 * 3
    w = jax.random.normal(kw, (Cout, Cin, 3, 3), dtype=jnp.float32) / jnp.sqrt(fan_in)
    b = jax.random.uniform(kb, (Cout,), dtype=jnp.float32,
                           minval=-1.0 / jnp.sqrt(fan_in),
                           maxval=1.0 / jnp.sqrt(fan_in))

    out = jax.block_until_ready(conv_relu_pool(x, w, b))
    ref = jax.block_until_ready(_reference(x, w, b))

    assert out.shape == (N, Cout, H // 2, W // 2), out.shape
    assert jnp.allclose(out, ref, atol=1e-5, rtol=1e-5), "mismatch vs reference"

    print("KERNEL_OK")
</pallas_src>

<mosaic_0001>
module attributes {stable_mosaic.version = 11 : i64} {
  func.func @conv_relu_pool_kernel(%arg0: i32, %arg1: memref<1x16x16x4xf32, #tpu.memory_space<vmem>>, %arg2: memref<36x128xf32, #tpu.memory_space<vmem>>, %arg3: memref<1x128xf32, #tpu.memory_space<vmem>>, %arg4: memref<1x8x8x128xf32, #tpu.memory_space<vmem>>, %arg5: memref<18x18x4xf32, #tpu.memory_space<vmem>>) attributes {dimension_semantics = [#tpu.dimension_semantics<parallel>], iteration_bounds = array<i64: 2>, scalar_prefetch = 0 : i64, scratch_operands = 1 : i64, tpu.core_type = #tpu.core_type<tc>, window_params = [{transform_indices = @transform_0, window_bounds = array<i64: 1, 16, 16, 4>}, {pipeline_mode = #tpu.pipeline_mode<synchronous>, transform_indices = @transform_1, window_bounds = array<i64: 36, 128>}, {pipeline_mode = #tpu.pipeline_mode<synchronous>, transform_indices = @transform_2, window_bounds = array<i64: 1, 128>}, {transform_indices = @transform_3, window_bounds = array<i64: 1, 8, 8, 128>}]} {
    %cst = arith.constant 0.000000e+00 : f32
    %0 = vector.broadcast %cst : f32 to vector<18x18x4xf32>
    %c0 = arith.constant 0 : index
    %c0_0 = arith.constant 0 : index
    %c0_1 = arith.constant 0 : index
    %1 = vector.load %arg5[%c0, %c0_0, %c0_1] : memref<18x18x4xf32, #tpu.memory_space<vmem>>, vector<18x18x4xf32>
    tpu.vector_store %arg5[%c0, %c0_0, %c0_1], %0 {strides = array<i32>} : memref<18x18x4xf32, #tpu.memory_space<vmem>>, vector<18x18x4xf32>,
    %c0_2 = arith.constant 0 : index
    %c0_3 = arith.constant 0 : index
    %c0_4 = arith.constant 0 : index
    %c0_5 = arith.constant 0 : index
    %2 = vector.load %arg1[%c0_2, %c0_3, %c0_4, %c0_5] : memref<1x16x16x4xf32, #tpu.memory_space<vmem>>, vector<1x16x16x4xf32>
    %3 = vector.shape_cast %2 : vector<1x16x16x4xf32> to vector<16x16x4xf32>
    %c1 = arith.constant 1 : index
    %c1_6 = arith.constant 1 : index
    %c0_7 = arith.constant 0 : index
    %4 = vector.load %arg5[%c1, %c1_6, %c0_7] : memref<18x18x4xf32, #tpu.memory_space<vmem>>, vector<16x16x4xf32>
    tpu.vector_store %arg5[%c1, %c1_6, %c0_7], %3 {strides = array<i32>} : memref<18x18x4xf32, #tpu.memory_space<vmem>>, vector<16x16x4xf32>,
    %c0_8 = arith.constant 0 : index
    %c0_9 = arith.constant 0 : index
    %c0_10 = arith.constant 0 : index
    %5 = vector.load %arg5[%c0_8, %c0_9, %c0_10] : memref<18x18x4xf32, #tpu.memory_space<vmem>>, vector<18x18x4xf32>
    %6 = vector.extract_strided_slice %5 {offsets = [0, 0, 0], sizes = [16, 16, 4], strides = [1, 1, 1]} : vector<18x18x4xf32> to vector<16x16x4xf32>
    %7 = vector.extract_strided_slice %5 {offsets = [0, 1, 0], sizes = [16, 16, 4], strides = [1, 1, 1]} : vector<18x18x4xf32> to vector<16x16x4xf32>
    %8 = vector.extract_strided_slice %5 {offsets = [0, 2, 0], sizes = [16, 16, 4], strides = [1, 1, 1]} : vector<18x18x4xf32> to vector<16x16x4xf32>
    %9 = vector.extract_strided_slice %5 {offsets = [1, 0, 0], sizes = [16, 16, 4], strides = [1, 1, 1]} : vector<18x18x4xf32> to vector<16x16x4xf32>
    %10 = vector.extract_strided_slice %5 {offsets = [1, 1, 0], sizes = [16, 16, 4], strides = [1, 1, 1]} : vector<18x18x4xf32> to vector<16x16x4xf32>
    %11 = vector.extract_strided_slice %5 {offsets = [1, 2, 0], sizes = [16, 16, 4], strides = [1, 1, 1]} : vector<18x18x4xf32> to vector<16x16x4xf32>
    %12 = vector.extract_strided_slice %5 {offsets = [2, 0, 0], sizes = [16, 16, 4], strides = [1, 1, 1]} : vector<18x18x4xf32> to vector<16x16x4xf32>
    %13 = vector.extract_strided_slice %5 {offsets = [2, 1, 0], sizes = [16, 16, 4], strides = [1, 1, 1]} : vector<18x18x4xf32> to vector<16x16x4xf32>
    %14 = vector.extract_strided_slice %5 {offsets = [2, 2, 0], sizes = [16, 16, 4], strides = [1, 1, 1]} : vector<18x18x4xf32> to vector<16x16x4xf32>
    %15 = tpu.concatenate %6, %7, %8, %9, %10, %11, %12, %13, %14 in 2 : vector<16x16x4xf32>, vector<16x16x4xf32>, vector<16x16x4xf32>, vector<16x16x4xf32>, vector<16x16x4xf32>, vector<16x16x4xf32>, vector<16x16x4xf32>, vector<16x16x4xf32>, vector<16x16x4xf32> -> vector<16x16x36xf32>
    %16 = vector.shape_cast %15 : vector<16x16x36xf32> to vector<256x36xf32>
    %c0_11 = arith.constant 0 : index
    %c0_12 = arith.constant 0 : index
    %17 = vector.load %arg2[%c0_11, %c0_12] : memref<36x128xf32, #tpu.memory_space<vmem>>, vector<36x128xf32>
    %cst_13 = arith.constant dense<0.000000e+00> : vector<256x128xf32>
    %18 = tpu.matmul %16, %17, %cst_13 {dimension_numbers = #tpu.dot_dimension_numbers<[1], [0], [0], [1], [0, 0, 1, 1], [], []>} : vector<256x36xf32>, vector<36x128xf32>, vector<256x128xf32> -> vector<256x128xf32>
    %c0_14 = arith.constant 0 : index
    %c0_15 = arith.constant 0 : index
    %19 = vector.load %arg3[%c0_14, %c0_15] : memref<1x128xf32, #tpu.memory_space<vmem>>, vector<1x128xf32>
    %20 = vector.broadcast %19 : vector<1x128xf32> to vector<256x128xf32>
    %21 = arith.addf %18, %20 : vector<256x128xf32>
    %cst_16 = arith.constant 0.000000e+00 : f32
    %22 = vector.broadcast %cst_16 : f32 to vector<256x128xf32>
    %23 = arith.maximumf %21, %22 : vector<256x128xf32>
    %24 = vector.shape_cast %23 : vector<256x128xf32> to vector<128x2x128xf32>
    %25 = vector.extract_strided_slice %24 {offsets = [0, 0, 0], sizes = [128, 1, 128], strides = [1, 1, 1]} : vector<128x2x128xf32> to vector<128x1x128xf32>
    %26 = vector.shape_cast %25 : vector<128x1x128xf32> to vector<128x128xf32>
    %27 = vector.extract_strided_slice %24 {offsets = [0, 1, 0], sizes = [128, 1, 128], strides = [1, 1, 1]} : vector<128x2x128xf32> to vector<128x1x128xf32>
    %28 = vector.shape_cast %27 : vector<128x1x128xf32> to vector<128x128xf32>
    %29 = arith.maximumf %26, %28 : vector<128x128xf32>
    %30 = vector.shape_cast %29 : vector<128x128xf32> to vector<8x2x8x128xf32>
    %31 = vector.extract_strided_slice %30 {offsets = [0, 0, 0, 0], sizes = [8, 1, 8, 128], strides = [1, 1, 1, 1]} : vector<8x2x8x128xf32> to vector<8x1x8x128xf32>
    %32 = vector.shape_cast %31 : vector<8x1x8x128xf32> to vector<8x8x128xf32>
    %33 = vector.extract_strided_slice %30 {offsets = [0, 1, 0, 0], sizes = [8, 1, 8, 128], strides = [1, 1, 1, 1]} : vector<8x2x8x128xf32> to vector<8x1x8x128xf32>
    %34 = vector.shape_cast %33 : vector<8x1x8x128xf32> to vector<8x8x128xf32>
    %35 = arith.maximumf %32, %34 : vector<8x8x128xf32>
    %c0_17 = arith.constant 0 : index
    %c0_18 = arith.constant 0 : index
    %c0_19 = arith.constant 0 : index
    %c0_20 = arith.constant 0 : index
    %36 = vector.load %arg4[%c0_17, %c0_18, %c0_19, %c0_20] : memref<1x8x8x128xf32, #tpu.memory_space<vmem>>, vector<1x8x8x128xf32>
    %37 = vector.shape_cast %36 : vector<1x8x8x128xf32> to vector<8x8x128xf32>
    %38 = vector.shape_cast %35 : vector<8x8x128xf32> to vector<1x8x8x128xf32>
    tpu.vector_store %arg4[%c0_17, %c0_18, %c0_19, %c0_20], %38 {strides = array<i32>} : memref<1x8x8x128xf32, #tpu.memory_space<vmem>>, vector<1x8x8x128xf32>,
    return
  }
  func.func @transform_0(%arg0: i32) -> (i32, i32, i32, i32) {
    %c0_i32 = arith.constant 0 : i32
    %c0_i32_0 = arith.constant 0 : i32
    %c0_i32_1 = arith.constant 0 : i32
    %c0_i32_2 = arith.constant 0 : i32
    return %arg0, %c0_i32, %c0_i32_0, %c0_i32_1 : i32, i32, i32, i32
  }
  func.func @transform_1(%arg0: i32) -> (i32, i32) {
    %c0_i32 = arith.constant 0 : i32
    %c0_i32_0 = arith.constant 0 : i32
    %c0_i32_1 = arith.constant 0 : i32
    return %c0_i32, %c0_i32_0 : i32, i32
  }
  func.func @transform_2(%arg0: i32) -> (i32, i32) {
    %c0_i32 = arith.constant 0 : i32
    %c0_i32_0 = arith.constant 0 : i32
    %c0_i32_1 = arith.constant 0 : i32
    return %c0_i32, %c0_i32_0 : i32, i32
  }
  func.func @transform_3(%arg0: i32) -> (i32, i32, i32, i32) {
    %c0_i32 = arith.constant 0 : i32
    %c0_i32_0 = arith.constant 0 : i32
    %c0_i32_1 = arith.constant 0 : i32
    %c0_i32_2 = arith.constant 0 : i32
    return %arg0, %c0_i32, %c0_i32_0, %c0_i32_1 : i32, i32, i32, i32
  }
}

</mosaic_0001>

<llo_original>
// kernel: tpu_custom_call.1
$region0: #{tpu_custom_call.1}
  #allocation0 [shape = 'u32[]', space=smem, size = 0x4, offset = 0x4, fixed_abs, tag = 'smem constant byte address 0x4 - core index']
  #allocation1 [shape = 'u32[144,128]{1,0:T(1,128)}', space=vmem, size = 0x12000, scoped, tag = 'internal scratch']
  #allocation2 [shape = 'f32[18,18,4]{2,1,0:T(8,128)}', space=vmem, size = 0x36000, scoped, tag = 'scratch operand']
  %s0 = inlined_call_operand.vmem [shape: f32[2,16,16,4], index: 0, kind: input, shape index: {}]
  %s1 = inlined_call_operand.vmem [shape: f32[36,128], index: 1, kind: input, shape index: {}]
  %s2 = inlined_call_operand.vmem [shape: f32[1,128], index: 2, kind: input, shape index: {}]
  %s3 = inlined_call_operand.hbm [shape: f32[2,8,8,128], index: 3, kind: output, shape index: {}]
  %s4 = sld [smem:[#allocation0]]
  $region45: #{tpu_custom_call.1} parent=0
    _
  %s6 = ssub.s32 1, %s4
  %s7 = scalar_select 0, %s6, %s4
  $region1: #{tpu_custom_call.1} parent=0
    #allocation3 [shape = 'u8[65536]{0}', space=vmem, size = 0x10000, scoped, tag = 'output window, operand 0']
    #allocation4 [shape = 's32[2]{0}', space=sflag, size = 0x8, scoped, tag = 'scoped memory for tpu_custom_call.1']
    %8 = vsyncpa [#allocation4], 0
    %s9 = scalar_lea.sflag [#allocation4], 1
    %10 = vsyncpa %s9, 0
    loop: start=0, step=1, limit=4
    $region2: #{tpu_custom_call.1} parent=1 // loop_pre_header
      _
    $region3: #{tpu_custom_call.1} parent=1 // loop_header
      %s12 = sphi 0, %s16
      %p13 = scmp.ge.s32.totalorder %s12, 4
      %s22 = sphi 0, %s24
      %s25 = sphi 0, %s22
      %s26 = sphi 0, %s25
      %s42 = sphi 0, %s26
      %s46 = sphi 0, %s46
      %s48 = sphi 0, %s46
      %s49 = sphi 0, %s48
      %s63 = sphi 0, %s49
      %s67 = sphi 0, %s67
      %s69 = sphi 0, %s67
      %s70 = sphi 0, %s69
      %s84 = sphi 0, %s70
      %s90 = sphi 0, %s92
      %s93 = sphi 0, %s90
      %s94 = sphi 0, %s93
      %s110 = sphi 0, %s94
    $region4: #{tpu_custom_call.1} parent=1 // loop_header_branch
      %15 = sbr.rel (%p13) target = $region8
    $region5: #{tpu_custom_call.1} parent=1 // loop_body
      %s17 = ssub.s32 %s12, 1
      %s18 = ssub.s32 %s12, 2
      %s19 = sadd.s32 %s12, 1
      %s20 = ssub.s32 %s12, %s19
      %p21 = scmp.eq.s32.totalorder %s20, 0
      %s23 = sadd.s32 %s22, 1
      %s24 = scalar_select %p21, %s22, %s23
      %p27 = pneg %p21
      %p28 = scmp.eq.s32.totalorder %s12, 1
      %p29 = por %p27, %p28
      %p30 = scmp.ne.s32.totalorder %s22, %s25
      %p31 = scmp.eq.s32.totalorder %s12, 0
      %p32 = por %p30, %p31
      %p33 = scmp.ne.s32.totalorder %s22, %s25
      %p34 = scmp.eq.s32.totalorder %s17, 1
      %p35 = por %p33, %p34
      %p36 = scmp.ne.s32.totalorder %s25, %s26
      %p37 = scmp.eq.s32.totalorder %s17, 0
      %p38 = por %p36, %p37
      %p39 = scmp.ne.s32.totalorder %s25, %s26
      %p40 = scmp.eq.s32.totalorder %s18, 1
      %p41 = por %p39, %p40
      %p43 = scmp.ne.s32.totalorder %s26, %s42
      %p44 = scmp.eq.s32.totalorder %s18, 0
      %p45 = por %p43, %p44
      %s47 = sadd.s32 %s46, 1
      %p50 = scmp.eq.s32.totalorder %s12, 1
      %p51 = scmp.ne.s32.totalorder %s46, %s48
      %p52 = scmp.eq.s32.totalorder %s12, 0
      %p53 = por %p51, %p52
      %p54 = scmp.ne.s32.totalorder %s46, %s48
      %p55 = scmp.eq.s32.totalorder %s17, 1
      %p56 = por %p54, %p55
      %p57 = scmp.ne.s32.totalorder %s48, %s49
      %p58 = scmp.eq.s32.totalorder %s17, 0
      %p59 = por %p57, %p58
      %p60 = scmp.ne.s32.totalorder %s48, %s49
      %p61 = scmp.eq.s32.totalorder %s18, 1
      %p62 = por %p60, %p61
      %p64 = scmp.ne.s32.totalorder %s49, %s63
      %p65 = scmp.eq.s32.totalorder %s18, 0
      %p66 = por %p64, %p65
      %s68 = sadd.s32 %s67, 1
      %p71 = scmp.eq.s32.totalorder %s12, 1
      %p72 = scmp.ne.s32.totalorder %s67, %s69
      %p73 = scmp.eq.s32.totalorder %s12, 0
      %p74 = por %p72, %p73
      %p75 = scmp.ne.s32.totalorder %s67, %s69
      %p76 = scmp.eq.s32.totalorder %s17, 1
      %p77 = por %p75, %p76
      %p78 = scmp.ne.s32.totalorder %s69, %s70
      %p79 = scmp.eq.s32.totalorder %s17, 0
      %p80 = por %p78, %p79
      %p81 = scmp.ne.s32.totalorder %s69, %s70
      %p82 = scmp.eq.s32.totalorder %s18, 1
      %p83 = por %p81, %p82
      %p85 = scmp.ne.s32.totalorder %s70, %s84
      %p86 = scmp.eq.s32.totalorder %s18, 0
      %p87 = por %p85, %p86
      %s88 = ssub.s32 %s12, %s19
      %p89 = scmp.eq.s32.totalorder %s88, 0
      %s91 = sadd.s32 %s90, 1
      %s92 = scalar_select %p89, %s90, %s91
      %p95 = pneg %p89
      %p96 = scmp.eq.s32.totalorder %s12, 1
      %p97 = por %p95, %p96
      %p98 = scmp.ne.s32.totalorder %s90, %s93
      %p99 = scmp.eq.s32.totalorder %s12, 0
      %p100 = por %p98, %p99
      %p101 = scmp.ne.s32.totalorder %s90, %s93
      %p102 = scmp.eq.s32.totalorder %s17, 1
      %p103 = por %p101, %p102
      %p104 = scmp.ne.s32.totalorder %s93, %s94
      %p105 = scmp.eq.s32.totalorder %s17, 0
      %p106 = por %p104, %p105
      %p107 = scmp.ne.s32.totalorder %s93, %s94
      %p108 = scmp.eq.s32.totalorder %s18, 1
      %p109 = por %p107, %p108
      %p111 = scmp.ne.s32.totalorder %s94, %s110
      %p112 = scmp.eq.s32.totalorder %s18, 0
      %p113 = por %p111, %p112
      %p114 = scmp.le.s32.totalorder 1, %s12
      %p115 = scmp.lt.s32.totalorder %s12, 3
      %p116 = pnand %p114, %p115
      %p117 = pneg %p116
      // Predicated region
      $region9: #{tpu_custom_call.1} parent=5 // pred_check
        _
      $region10: #{tpu_custom_call.1} parent=5 // pred_check_branch
        %119 = sbr.rel (%p116) target = $region12
      $region11: #{tpu_custom_call.1} parent=5 // pred_region
        %s120 = ssub.s32 %s12, 1
        // Predicated region
        $region13: #{tpu_custom_call.1} parent=11 // pred_check
          %p121 = pneg %p59
        $region14: #{tpu_custom_call.1} parent=11 // pred_check_branch
          %123 = sbr.rel (%p121) target = $region16
        $region15: #{tpu_custom_call.1} parent=11 // pred_region
          _
        $region16: #{tpu_custom_call.1} parent=11 // pred_fallthru
          _
        // Predicated region
        $region17: #{tpu_custom_call.1} parent=11 // pred_check
          %p124 = pneg %p80
        $region18: #{tpu_custom_call.1} parent=11 // pred_check_branch
          %126 = sbr.rel (%p124) target = $region20
        $region19: #{tpu_custom_call.1} parent=11 // pred_region
          _
        $region20: #{tpu_custom_call.1} parent=11 // pred_fallthru
          _
      $region12: #{tpu_custom_call.1} parent=5 // pred_fallthru
        _
      %p127 = scmp.lt.s32.totalorder %s12, 2
      // Predicated region
      $region21: #{tpu_custom_call.1} parent=5 // pred_check
        %p128 = pneg %p127
      $region22: #{tpu_custom_call.1} parent=5 // pred_check_branch
        %130 = sbr.rel (%p128) target = $region24
      $region23: #{tpu_custom_call.1} parent=5 // pred_region
        // Predicated region
        $region25: #{tpu_custom_call.1} parent=23 // pred_check
          %p131 = pneg %p32
        $region26: #{tpu_custom_call.1} parent=23 // pred_check_branch
          %133 = sbr.rel (%p131) target = $region28
        $region27: #{tpu_custom_call.1} parent=23 // pred_region
          %p134 = scmp.lt.s32.totalorder %s12, 1
          %s135 = scalar_select %p134, %s12, 1
          %s136 = smul.addr %s135, 32
          %s137 = smul.addr %s136, 8
          %s138 = scalar_lea.vmem %s0, %s137
        $region28: #{tpu_custom_call.1} parent=23 // pred_fallthru
          _
      $region24: #{tpu_custom_call.1} parent=5 // pred_fallthru
        _
      %p139 = scmp.le.s32.totalorder 1, %s12
      %p140 = scmp.lt.s32.totalorder %s12, 3
      %p141 = pnand %p139, %p140
      %p142 = pneg %p141
      // Predicated region
      $region29: #{tpu_custom_call.1} parent=5 // pred_check
        _
      $region30: #{tpu_custom_call.1} parent=5 // pred_check_branch
        %144 = sbr.rel (%p141) target = $region32
      $region31: #{tpu_custom_call.1} parent=5 // pred_region
        %s145 = ssub.s32 %s12, 1
        %p146 = scmp.lt.s32.totalorder %s17, 1
        %s147 = scalar_select %p146, %s17, 1
        %s148 = smul.addr %s147, 32
        %s149 = smul.addr %s148, 8
        %s150 = scalar_lea.vmem %s0, %s149
        %p151 = pneg %p38
        %p152 = pneg %p35
        %p153 = pneg %p59
        %p154 = pneg %p56
        %p155 = pneg %p80
        %p156 = pneg %p77
        %p157 = pneg %p106
        %p158 = pneg %p103
        %s159 = sand.u32 %s93, 1
        %s160 = scalar_lea.sflag [#allocation4], %s159
        %s161 = sand.u32 %s93, 1
        %s162 = smul.addr %s161, 64
        %s163 = scalar_lea.vmem [#allocation3], %s162
        %p164 = scmp.lt.s32.totalorder %s17, 1
        %s165 = scalar_select %p164, %s17, 1
        %s166 = smul.addr %s165, 32
        %s167 = smul.addr %s166, 8
        %s168 = scalar_lea.vmem %s0, %s167
        %vm169 = vcmask 31744
        %170 = vst.msk [vmem:[#allocation2] sm:$0xff] %vm169, 0.0
        %171 = vst.msk [vmem:[#allocation2 + $0x8] sm:$0xff] %vm169, 0.0
        %vm172 = vcmask 25600
        %173 = vst.msk [vmem:[#allocation2 + $0x10] sm:$0x3] %vm172, 0.0
        %174 = vst.msk [vmem:[#allocation2 + $0x18] sm:$0xff] %vm169, 0.0
        %175 = vst.msk [vmem:[#allocation2 + $0x20] sm:$0xff] %vm169, 0.0
        %176 = vst.msk [vmem:[#allocation2 + $0x28] sm:$0x3] %vm172, 0.0
        %177 = vst.msk [vmem:[#allocation2 + $0x30] sm:$0xff] %vm169, 0.0
        %178 = vst.msk [vmem:[#allocation2 + $0x38] sm:$0xff] %vm169, 0.0
        %179 = vst.msk [vmem:[#allocation2 + $0x40] sm:$0x3] %vm172, 0.0
        %180 = vst.msk [vmem:[#allocation2 + $0x48] sm:$0xff] %vm169, 0.0
        %181 = vst.msk [vmem:[#allocation2 + $0x50] sm:$0xff] %vm169, 0.0
        %182 = vst.msk [vmem:[#allocation2 + $0x58] sm:$0x3] %vm172, 0.0
        %183 = vst.msk [vmem:[#allocation2 + $0x60] sm:$0xff] %vm169, 0.0
        %184 = vst.msk [vmem:[#allocation2 + $0x68] sm:$0xff] %vm169, 0.0
        %185 = vst.msk [vmem:[#allocation2 + $0x70] sm:$0x3] %vm172, 0.0
        %186 = vst.msk [vmem:[#allocation2 + $0x78] sm:$0xff] %vm169, 0.0
        %187 = vst.msk [vmem:[#allocation2 + $0x80] sm:$0xff] %vm169, 0.0
        %188 = vst.msk [vmem:[#allocation2 + $0x88] sm:$0x3] %vm172, 0.0
        %189 = vst.msk [vmem:[#allocation2 + $0x90] sm:$0xff] %vm169, 0.0
        %190 = vst.msk [vmem:[#allocation2 + $0x98] sm:$0xff] %vm169, 0.0
        %191 = vst.msk [vmem:[#allocation2 + $0xa0] sm:$0x3] %vm172, 0.0
        %192 = vst.msk [vmem:[#allocation2 + $0xa8] sm:$0xff] %vm169, 0.0
        %193 = vst.msk [vmem:[#allocation2 + $0xb0] sm:$0xff] %vm169, 0.0
        %194 = vst.msk [vmem:[#allocation2 + $0xb8] sm:$0x3] %vm172, 0.0
        %195 = vst.msk [vmem:[#allocation2 + $0xc0] sm:$0xff] %vm169, 0.0
        %196 = vst.msk [vmem:[#allocation2 + $0xc8] sm:$0xff] %vm169, 0.0
        %197 = vst.msk [vmem:[#allocation2 + $0xd0] sm:$0x3] %vm172, 0.0
        %198 = vst.msk [vmem:[#allocation2 + $0xd8] sm:$0xff] %vm169, 0.0
        %199 = vst.msk [vmem:[#allocation2 + $0xe0] sm:$0xff] %vm169, 0.0
        %200 = vst.msk [vmem:[#allocation2 + $0xe8] sm:$0x3] %vm172, 0.0
        %201 = vst.msk [vmem:[#allocation2 + $0xf0] sm:$0xff] %vm169, 0.0
        %202 = vst.msk [vmem:[#allocation2 + $0xf8] sm:$0xff] %vm169, 0.0
        %203 = vst.msk [vmem:[#allocation2 + $0x100] sm:$0x3] %vm172, 0.0
        %204 = vst.msk [vmem:[#allocation2 + $0x108] sm:$0xff] %vm169, 0.0
        %205 = vst.msk [vmem:[#allocation2 + $0x110] sm:$0xff] %vm169, 0.0
        %206 = vst.msk [vmem:[#allocation2 + $0x118] sm:$0x3] %vm172, 0.0
        %207 = vst.msk [vmem:[#allocation2 + $0x120] sm:$0xff] %vm169, 0.0
        %208 = vst.msk [vmem:[#allocation2 + $0x128] sm:$0xff] %vm169, 0.0
        %209 = vst.msk [vmem:[#allocation2 + $0x130] sm:$0x3] %vm172, 0.0
        %210 = vst.msk [vmem:[#allocation2 + $0x138] sm:$0xff] %vm169, 0.0
        %211 = vst.msk [vmem:[#allocation2 + $0x140] sm:$0xff] %vm169, 0.0
        %212 = vst.msk [vmem:[#allocation2 + $0x148] sm:$0x3] %vm172, 0.0
        %213 = vst.msk [vmem:[#allocation2 + $0x150] sm:$0xff] %vm169, 0.0
        %214 = vst.msk [vmem:[#allocation2 + $0x158] sm:$0xff] %vm169, 0.0
        %215 = vst.msk [vmem:[#allocation2 + $0x160] sm:$0x3] %vm172, 0.0
        %216 = vst.msk [vmem:[#allocation2 + $0x168] sm:$0xff] %vm169, 0.0
        %217 = vst.msk [vmem:[#allocation2 + $0x170] sm:$0xff] %vm169, 0.0
        %218 = vst.msk [vmem:[#allocation2 + $0x178] sm:$0x3] %vm172, 0.0
        %219 = vst.msk [vmem:[#allocation2 + $0x180] sm:$0xff] %vm169, 0.0
        %220 = vst.msk [vmem:[#allocation2 + $0x188] sm:$0xff] %vm169, 0.0
        %221 = vst.msk [vmem:[#allocation2 + $0x190] sm:$0x3] %vm172, 0.0
        %222 = vst.msk [vmem:[#allocation2 + $0x198] sm:$0xff] %vm169, 0.0
        %223 = vst.msk [vmem:[#allocation2 + $0x1a0] sm:$0xff] %vm169, 0.0
        %224 = vst.msk [vmem:[#allocation2 + $0x1a8] sm:$0x3] %vm172, 0.0
        %v225 = vld [vmem:[%s168] sm:$0xff]
        %v226 = vld [vmem:[%s168 + $0x8] sm:$0xff]
        %v227 = vld [vmem:[%s168 + $0x10] sm:$0xff]
        %v228 = vld [vmem:[%s168 + $0x18] sm:$0xff]
        %v229 = vld [vmem:[%s168 + $0x20] sm:$0xff]
        %v230 = vld [vmem:[%s168 + $0x28] sm:$0xff]
        %v231 = vld [vmem:[%s168 + $0x30] sm:$0xff]
        %v232 = vld [vmem:[%s168 + $0x38] sm:$0xff]
        %v233 = vld [vmem:[%s168 + $0x40] sm:$0xff]
        %v234 = vld [vmem:[%s168 + $0x48] sm:$0xff]
        %v235 = vld [vmem:[%s168 + $0x50] sm:$0xff]
        %v236 = vld [vmem:[%s168 + $0x58] sm:$0xff]
        %v237 = vld [vmem:[%s168 + $0x60] sm:$0xff]
        %v238 = vld [vmem:[%s168 + $0x68] sm:$0xff]
        %v239 = vld [vmem:[%s168 + $0x70] sm:$0xff]
        %v240 = vld [vmem:[%s168 + $0x78] sm:$0xff]
        %v241 = vld [vmem:[%s168 + $0x80] sm:$0xff]
        %v242 = vld [vmem:[%s168 + $0x88] sm:$0xff]
        %v243 = vld [vmem:[%s168 + $0x90] sm:$0xff]
        %v244 = vld [vmem:[%s168 + $0x98] sm:$0xff]
        %v245 = vld [vmem:[%s168 + $0xa0] sm:$0xff]
        %v246 = vld [vmem:[%s168 + $0xa8] sm:$0xff]
        %v247 = vld [vmem:[%s168 + $0xb0] sm:$0xff]
        %v248 = vld [vmem:[%s168 + $0xb8] sm:$0xff]
        %v249 = vld [vmem:[%s168 + $0xc0] sm:$0xff]
        %v250 = vld [vmem:[%s168 + $0xc8] sm:$0xff]
        %v251 = vld [vmem:[%s168 + $0xd0] sm:$0xff]
        %v252 = vld [vmem:[%s168 + $0xd8] sm:$0xff]
        %v253 = vld [vmem:[%s168 + $0xe0] sm:$0xff]
        %v254 = vld [vmem:[%s168 + $0xe8] sm:$0xff]
        %v255 = vld [vmem:[%s168 + $0xf0] sm:$0xff]
        %v256 = vld [vmem:[%s168 + $0xf8] sm:$0xff]
        %s257 = scalar_lea.vmem [#allocation2], 24
        %258 = vst.msk [vmem:[%s257 + $0x1] sm:$0xff] %vm169, %v225
        %259 = vst.msk [vmem:[%s257 + $0x9] sm:$0xff] %vm169, %v226
        %260 = vst.msk [vmem:[%s257 + $0x19] sm:$0xff] %vm169, %v227
        %261 = vst.msk [vmem:[%s257 + $0x21] sm:$0xff] %vm169, %v228
        %262 = vst.msk [vmem:[%s257 + $0x31] sm:$0xff] %vm169, %v229
        %263 = vst.msk [vmem:[%s257 + $0x39] sm:$0xff] %vm169, %v230
        %264 = vst.msk [vmem:[%s257 + $0x49] sm:$0xff] %vm169, %v231
        %265 = vst.msk [vmem:[%s257 + $0x51] sm:$0xff] %vm169, %v232
        %266 = vst.msk [vmem:[%s257 + $0x61] sm:$0xff] %vm169, %v233
        %267 = vst.msk [vmem:[%s257 + $0x69] sm:$0xff] %vm169, %v234
        %268 = vst.msk [vmem:[%s257 + $0x79] sm:$0xff] %vm169, %v235
        %269 = vst.msk [vmem:[%s257 + $0x81] sm:$0xff] %vm169, %v236
        %270 = vst.msk [vmem:[%s257 + $0x91] sm:$0xff] %vm169, %v237
        %271 = vst.msk [vmem:[%s257 + $0x99] sm:$0xff] %vm169, %v238
        %272 = vst.msk [vmem:[%s257 + $0xa9] sm:$0xff] %vm169, %v239
        %273 = vst.msk [vmem:[%s257 + $0xb1] sm:$0xff] %vm169, %v240
        %274 = vst.msk [vmem:[%s257 + $0xc1] sm:$0xff] %vm169, %v241
        %275 = vst.msk [vmem:[%s257 + $0xc9] sm:$0xff] %vm169, %v242
        %276 = vst.msk [vmem:[%s257 + $0xd9] sm:$0xff] %vm169, %v243
        %277 = vst.msk [vmem:[%s257 + $0xe1] sm:$0xff] %vm169, %v244
        %278 = vst.msk [vmem:[%s257 + $0xf1] sm:$0xff] %vm169, %v245
        %279 = vst.msk [vmem:[%s257 + $0xf9] sm:$0xff] %vm169, %v246
        %280 = vst.msk [vmem:[%s257 + $0x109] sm:$0xff] %vm169, %v247
        %281 = vst.msk [vmem:[%s257 + $0x111] sm:$0xff] %vm169, %v248
        %282 = vst.msk [vmem:[%s257 + $0x121] sm:$0xff] %vm169, %v249
        %283 = vst.msk [vmem:[%s257 + $0x129] sm:$0xff] %vm169, %v250
        %284 = vst.msk [vmem:[%s257 + $0x139] sm:$0xff] %vm169, %v251
        %285 = vst.msk [vmem:[%s257 + $0x141] sm:$0xff] %vm169, %v252
        %286 = vst.msk [vmem:[%s257 + $0x151] sm:$0xff] %vm169, %v253
        %287 = vst.msk [vmem:[%s257 + $0x159] sm:$0xff] %vm169, %v254
        %288 = vst.msk [vmem:[%s257 + $0x169] sm:$0xff] %vm169, %v255
        %289 = vst.msk [vmem:[%s257 + $0x171] sm:$0xff] %vm169, %v256
        %v290 = vld [vmem:[#allocation2] sm:$0xff]
        %v291 = vld [vmem:[#allocation2 + $0x8] sm:$0xff]
        %v292 = vld [vmem:[#allocation2 + $0x10] sm:$0x3]
        %v293 = vld [vmem:[#allocation2 + $0x18] sm:$0xff]
        %v294 = vld [vmem:[#allocation2 + $0x20] sm:$0xff]
        %v295 = vld [vmem:[#allocation2 + $0x28] sm:$0x3]
        %v296 = vld [vmem:[#allocation2 + $0x30] sm:$0xff]
        %v297 = vld [vmem:[#allocation2 + $0x38] sm:$0xff]
        %v298 = vld [vmem:[#allocation2 + $0x40] sm:$0x3]
        %v299 = vld [vmem:[#allocation2 + $0x48] sm:$0xff]
        %v300 = vld [vmem:[#allocation2 + $0x50] sm:$0xff]
        %v301 = vld [vmem:[#allocation2 + $0x58] sm:$0x3]
        %v302 = vld [vmem:[#allocation2 + $0x60] sm:$0xff]
        %v303 = vld [vmem:[#allocation2 + $0x68] sm:$0xff]
        %v304 = vld [vmem:[#allocation2 + $0x70] sm:$0x3]
        %v305 = vld [vmem:[#allocation2 + $0x78] sm:$0xff]
        %v306 = vld [vmem:[#allocation2 + $0x80] sm:$0xff]
        %v307 = vld [vmem:[#allocation2 + $0x88] sm:$0x3]
        %v308 = vld [vmem:[#allocation2 + $0x90] sm:$0xff]
        %v309 = vld [vmem:[#allocation2 + $0x98] sm:$0xff]
        %v310 = vld [vmem:[#allocation2 + $0xa0] sm:$0x3]
        %v311 = vld [vmem:[#allocation2 + $0xa8] sm:$0xff]
        %v312 = vld [vmem:[#allocation2 + $0xb0] sm:$0xff]
        %v313 = vld [vmem:[#allocation2 + $0xb8] sm:$0x3]
        %v314 = vld [vmem:[#allocation2 + $0xc0] sm:$0xff]
        %v315 = vld [vmem:[#allocation2 + $0xc8] sm:$0xff]
        %v316 = vld [vmem:[#allocation2 + $0xd0] sm:$0x3]
        %v317 = vld [vmem:[#allocation2 + $0xd8] sm:$0xff]
        %v318 = vld [vmem:[#allocation2 + $0xe0] sm:$0xff]
        %v319 = vld [vmem:[#allocation2 + $0xe8] sm:$0x3]
        %v320 = vld [vmem:[#allocation2 + $0xf0] sm:$0xff]
        %v321 = vld [vmem:[#allocation2 + $0xf8] sm:$0xff]
        %v322 = vld [vmem:[#allocation2 + $0x100] sm:$0x3]
        %v323 = vld [vmem:[#allocation2 + $0x108] sm:$0xff]
        %v324 = vld [vmem:[#allocation2 + $0x110] sm:$0xff]
        %v325 = vld [vmem:[#allocation2 + $0x118] sm:$0x3]
        %v326 = vld [vmem:[#allocation2 + $0x120] sm:$0xff]
        %v327 = vld [vmem:[#allocation2 + $0x128] sm:$0xff]
        %v328 = vld [vmem:[#allocation2 + $0x130] sm:$0x3]
        %v329 = vld [vmem:[#allocation2 + $0x138] sm:$0xff]
        %v330 = vld [vmem:[#allocation2 + $0x140] sm:$0xff]
        %v331 = vld [vmem:[#allocation2 + $0x148] sm:$0x3]
        %v332 = vld [vmem:[#allocation2 + $0x150] sm:$0xff]
        %v333 = vld [vmem:[#allocation2 + $0x158] sm:$0xff]
        %v334 = vld [vmem:[#allocation2 + $0x160] sm:$0x3]
        %v335 = vld [vmem:[#allocation2 + $0x168] sm:$0xff]
        %v336 = vld [vmem:[#allocation2 + $0x170] sm:$0xff]
        %v337 = vld [vmem:[#allocation2 + $0x178] sm:$0x3]
        %v338 = vld [vmem:[#allocation2 + $0x180] sm:$0xff]
        %v339 = vld [vmem:[#allocation2 + $0x188] sm:$0xff]
        %v340 = vld [vmem:[#allocation2 + $0x190] sm:$0x3]
        %v341 = vld [vmem:[#allocation2 + $0x198] sm:$0xff]
        %v342 = vld [vmem:[#allocation2 + $0x1a0] sm:$0xff]
        %v343 = vld [vmem:[#allocation2 + $0x1a8] sm:$0x3]
        %vm392 = vcmask 1046528
        %v393 = vrot.slane %v290, 1
        %v394 = vrot.slane %v291, 1
        %v395 = vsel %vm392, %v393, %v394
        %v396 = vrot.slane %v292, 1
        %v397 = vsel %vm392, %v394, %v396
        %v398 = vrot.slane %v293, 1
        %v399 = vrot.slane %v294, 1
        %v400 = vsel %vm392, %v398, %v399
        %v401 = vrot.slane %v295, 1
        %v402 = vsel %vm392, %v399, %v401
        %v403 = vrot.slane %v296, 1
        %v404 = vrot.slane %v297, 1
        %v405 = vsel %vm392, %v403, %v404
        %v406 = vrot.slane %v298, 1
        %v407 = vsel %vm392, %v404, %v406
        %v408 = vrot.slane %v299, 1
        %v409 = vrot.slane %v300, 1
        %v410 = vsel %vm392, %v408, %v409
        %v411 = vrot.slane %v301, 1
        %v412 = vsel %vm392, %v409, %v411
        %v413 = vrot.slane %v302, 1
        %v414 = vrot.slane %v303, 1
        %v415 = vsel %vm392, %v413, %v414
        %v416 = vrot.slane %v304, 1
        %v417 = vsel %vm392, %v414, %v416
        %v418 = vrot.slane %v305, 1
        %v419 = vrot.slane %v306, 1
        %v420 = vsel %vm392, %v418, %v419
        %v421 = vrot.slane %v307, 1
        %v422 = vsel %vm392, %v419, %v421
        %v423 = vrot.slane %v308, 1
        %v424 = vrot.slane %v309, 1
        %v425 = vsel %vm392, %v423, %v424
        %v426 = vrot.slane %v310, 1
        %v427 = vsel %vm392, %v424, %v426
        %v428 = vrot.slane %v311, 1
        %v429 = vrot.slane %v312, 1
        %v430 = vsel %vm392, %v428, %v429
        %v431 = vrot.slane %v313, 1
        %v432 = vsel %vm392, %v429, %v431
        %v433 = vrot.slane %v314, 1
        %v434 = vrot.slane %v315, 1
        %v435 = vsel %vm392, %v433, %v434
        %v436 = vrot.slane %v316, 1
        %v437 = vsel %vm392, %v434, %v436
        %v438 = vrot.slane %v317, 1
        %v439 = vrot.slane %v318, 1
        %v440 = vsel %vm392, %v438, %v439
        %v441 = vrot.slane %v319, 1
        %v442 = vsel %vm392, %v439, %v441
        %v443 = vrot.slane %v320, 1
        %v444 = vrot.slane %v321, 1
        %v445 = vsel %vm392, %v443, %v444
        %v446 = vrot.slane %v322, 1
        %v447 = vsel %vm392, %v444, %v446
        %v448 = vrot.slane %v323, 1
        %v449 = vrot.slane %v324, 1
        %v450 = vsel %vm392, %v448, %v449
        %v451 = vrot.slane %v325, 1
        %v452 = vsel %vm392, %v449, %v451
        %v453 = vrot.slane %v326, 1
        %v454 = vrot.slane %v327, 1
        %v455 = vsel %vm392, %v453, %v454
        %v456 = vrot.slane %v328, 1
        %v457 = vsel %vm392, %v454, %v456
        %v458 = vrot.slane %v329, 1
        %v459 = vrot.slane %v330, 1
        %v460 = vsel %vm392, %v458, %v459
        %v461 = vrot.slane %v331, 1
        %v462 = vsel %vm392, %v459, %v461
        %v463 = vrot.slane %v332, 1
        %v464 = vrot.slane %v333, 1
        %v465 = vsel %vm392, %v463, %v464
        %v466 = vrot.slane %v334, 1
        %v467 = vsel %vm392, %v464, %v466
        %v468 = vrot.slane %v335, 1
        %v469 = vrot.slane %v336, 1
        %v470 = vsel %vm392, %v468, %v469
        %v471 = vrot.slane %v337, 1
        %v472 = vsel %vm392, %v469, %v471
        %473 = vrot.lane.b32.xlu0 %v395, 4
        %v474 = vpop.permute.xlu0 %473
        %475 = vrot.lane.b32.xlu0 %v397, 4
        %v476 = vpop.permute.xlu0 %475
        %477 = vrot.lane.b32.xlu0 %v400, 4
        %v478 = vpop.permute.xlu0 %477
        %479 = vrot.lane.b32.xlu0 %v402, 4
        %v480 = vpop.permute.xlu0 %479
        %481 = vrot.lane.b32.xlu0 %v405, 4
        %v482 = vpop.permute.xlu0 %481
        %483 = vrot.lane.b32.xlu0 %v407, 4
        %v484 = vpop.permute.xlu0 %483
        %485 = vrot.lane.b32.xlu0 %v410, 4
        %v486 = vpop.permute.xlu0 %485
        %487 = vrot.lane.b32.xlu0 %v412, 4
        %v488 = vpop.permute.xlu0 %487
        %489 = vrot.lane.b32.xlu0 %v415, 4
        %v490 = vpop.permute.xlu0 %489
        %491 = vrot.lane.b32.xlu0 %v417, 4
        %v492 = vpop.permute.xlu0 %491
        %493 = vrot.lane.b32.xlu0 %v420, 4
        %v494 = vpop.permute.xlu0 %493
        %495 = vrot.lane.b32.xlu0 %v422, 4
        %v496 = vpop.permute.xlu0 %495
        %497 = vrot.lane.b32.xlu0 %v425, 4
        %v498 = vpop.permute.xlu0 %497
        %499 = vrot.lane.b32.xlu0 %v427, 4
        %v500 = vpop.permute.xlu0 %499
        %501 = vrot.lane.b32.xlu0 %v430, 4
        %v502 = vpop.permute.xlu0 %501
        %503 = vrot.lane.b32.xlu0 %v432, 4
        %v504 = vpop.permute.xlu0 %503
        %505 = vrot.lane.b32.xlu0 %v435, 4
        %v506 = vpop.permute.xlu0 %505
        %507 = vrot.lane.b32.xlu0 %v437, 4
        %v508 = vpop.permute.xlu0 %507
        %509 = vrot.lane.b32.xlu0 %v440, 4
        %v510 = vpop.permute.xlu0 %509
        %511 = vrot.lane.b32.xlu0 %v442, 4
        %v512 = vpop.permute.xlu0 %511
        %513 = vrot.lane.b32.xlu0 %v445, 4
        %v514 = vpop.permute.xlu0 %513
        %515 = vrot.lane.b32.xlu0 %v447, 4
        %v516 = vpop.permute.xlu0 %515
        %517 = vrot.lane.b32.xlu0 %v450, 4
        %v518 = vpop.permute.xlu0 %517
        %519 = vrot.lane.b32.xlu0 %v452, 4
        %v520 = vpop.permute.xlu0 %519
        %521 = vrot.lane.b32.xlu0 %v455, 4
        %v522 = vpop.permute.xlu0 %521
        %523 = vrot.lane.b32.xlu0 %v457, 4
        %v524 = vpop.permute.xlu0 %523
        %525 = vrot.lane.b32.xlu0 %v460, 4
        %v526 = vpop.permute.xlu0 %525
        %527 = vrot.lane.b32.xlu0 %v462, 4
        %v528 = vpop.permute.xlu0 %527
        %529 = vrot.lane.b32.xlu0 %v465, 4
        %v530 = vpop.permute.xlu0 %529
        %531 = vrot.lane.b32.xlu0 %v467, 4
        %v532 = vpop.permute.xlu0 %531
        %533 = vrot.lane.b32.xlu0 %v470, 4
        %v534 = vpop.permute.xlu0 %533
        %535 = vrot.lane.b32.xlu0 %v472, 4
        %v536 = vpop.permute.xlu0 %535
        %vm569 = vcmask 1045504
        %v570 = vrot.slane %v290, 2
        %v571 = vrot.slane %v291, 2
        %v572 = vsel %vm569, %v570, %v571
        %v573 = vrot.slane %v292, 2
        %v574 = vsel %vm569, %v571, %v573
        %v575 = vrot.slane %v293, 2
        %v576 = vrot.slane %v294, 2
        %v577 = vsel %vm569, %v575, %v576
        %v578 = vrot.slane %v295, 2
        %v579 = vsel %vm569, %v576, %v578
        %v580 = vrot.slane %v296, 2
        %v581 = vrot.slane %v297, 2
        %v582 = vsel %vm569, %v580, %v581
        %v583 = vrot.slane %v298, 2
        %v584 = vsel %vm569, %v581, %v583
        %v585 = vrot.slane %v299, 2
        %v586 = vrot.slane %v300, 2
        %v587 = vsel %vm569, %v585, %v586
        %v588 = vrot.slane %v301, 2
        %v589 = vsel %vm569, %v586, %v588
        %v590 = vrot.slane %v302, 2
        %v591 = vrot.slane %v303, 2
        %v592 = vsel %vm569, %v590, %v591
        %v593 = vrot.slane %v304, 2
        %v594 = vsel %vm569, %v591, %v593
        %v595 = vrot.slane %v305, 2
        %v596 = vrot.slane %v306, 2
        %v597 = vsel %vm569, %v595, %v596
        %v598 = vrot.slane %v307, 2
        %v599 = vsel %vm569, %v596, %v598
        %v600 = vrot.slane %v308, 2
        %v601 = vrot.slane %v309, 2
        %v602 = vsel %vm569, %v600, %v601
        %v603 = vrot.slane %v310, 2
        %v604 = vsel %vm569, %v601, %v603
        %v605 = vrot.slane %v311, 2
        %v606 = vrot.slane %v312, 2
        %v607 = vsel %vm569, %v605, %v606
        %v608 = vrot.slane %v313, 2
        %v609 = vsel %vm569, %v606, %v608
        %v610 = vrot.slane %v314, 2
        %v611 = vrot.slane %v315, 2
        %v612 = vsel %vm569, %v610, %v611
        %v613 = vrot.slane %v316, 2
        %v614 = vsel %vm569, %v611, %v613
        %v615 = vrot.slane %v317, 2
        %v616 = vrot.slane %v318, 2
        %v617 = vsel %vm569, %v615, %v616
        %v618 = vrot.slane %v319, 2
        %v619 = vsel %vm569, %v616, %v618
        %v620 = vrot.slane %v320, 2
        %v621 = vrot.slane %v321, 2
        %v622 = vsel %vm569, %v620, %v621
        %v623 = vrot.slane %v322, 2
        %v624 = vsel %vm569, %v621, %v623
        %v625 = vrot.slane %v323, 2
        %v626 = vrot.slane %v324, 2
        %v627 = vsel %vm569, %v625, %v626
        %v628 = vrot.slane %v325, 2
        %v629 = vsel %vm569, %v626, %v628
        %v630 = vrot.slane %v326, 2
        %v631 = vrot.slane %v327, 2
        %v632 = vsel %vm569, %v630, %v631
        %v633 = vrot.slane %v328, 2
        %v634 = vsel %vm569, %v631, %v633
        %v635 = vrot.slane %v329, 2
        %v636 = vrot.slane %v330, 2
        %v637 = vsel %vm569, %v635, %v636
        %v638 = vrot.slane %v331, 2
        %v639 = vsel %vm569, %v636, %v638
        %v640 = vrot.slane %v332, 2
        %v641 = vrot.slane %v333, 2
        %v642 = vsel %vm569, %v640, %v641
        %v643 = vrot.slane %v334, 2
        %v644 = vsel %vm569, %v641, %v643
        %v645 = vrot.slane %v335, 2
        %v646 = vrot.slane %v336, 2
        %v647 = vsel %vm569, %v645, %v646
        %v648 = vrot.slane %v337, 2
        %v649 = vsel %vm569, %v646, %v648
        %650 = vrot.lane.b32.xlu0 %v572, 8
        %v651 = vpop.permute.xlu0 %650
        %652 = vrot.lane.b32.xlu0 %v574, 8
        %v653 = vpop.permute.xlu0 %652
        %654 = vrot.lane.b32.xlu0 %v577, 8
        %v655 = vpop.permute.xlu0 %654
        %656 = vrot.lane.b32.xlu0 %v579, 8
        %v657 = vpop.permute.xlu0 %656
        %658 = vrot.lane.b32.xlu0 %v582, 8
        %v659 = vpop.permute.xlu0 %658
        %660 = vrot.lane.b32.xlu0 %v584, 8
        %v661 = vpop.permute.xlu0 %660
        %662 = vrot.lane.b32.xlu0 %v587, 8
        %v663 = vpop.permute.xlu0 %662
        %664 = vrot.lane.b32.xlu0 %v589, 8
        %v665 = vpop.permute.xlu0 %664
        %666 = vrot.lane.b32.xlu0 %v592, 8
        %v667 = vpop.permute.xlu0 %666
        %668 = vrot.lane.b32.xlu0 %v594, 8
        %v669 = vpop.permute.xlu0 %668
        %670 = vrot.lane.b32.xlu0 %v597, 8
        %v671 = vpop.permute.xlu0 %670
        %672 = vrot.lane.b32.xlu0 %v599, 8
        %v673 = vpop.permute.xlu0 %672
        %674 = vrot.lane.b32.xlu0 %v602, 8
        %v675 = vpop.permute.xlu0 %674
        %676 = vrot.lane.b32.xlu0 %v604, 8
        %v677 = vpop.permute.xlu0 %676
        %678 = vrot.lane.b32.xlu0 %v607, 8
        %v679 = vpop.permute.xlu0 %678
        %680 = vrot.lane.b32.xlu0 %v609, 8
        %v681 = vpop.permute.xlu0 %680
        %682 = vrot.lane.b32.xlu0 %v612, 8
        %v683 = vpop.permute.xlu0 %682
        %684 = vrot.lane.b32.xlu0 %v614, 8
        %v685 = vpop.permute.xlu0 %684
        %686 = vrot.lane.b32.xlu0 %v617, 8
        %v687 = vpop.permute.xlu0 %686
        %688 = vrot.lane.b32.xlu0 %v619, 8
        %v689 = vpop.permute.xlu0 %688
        %690 = vrot.lane.b32.xlu0 %v622, 8
        %v691 = vpop.permute.xlu0 %690
        %692 = vrot.lane.b32.xlu0 %v624, 8
        %v693 = vpop.permute.xlu0 %692
        %694 = vrot.lane.b32.xlu0 %v627, 8
        %v695 = vpop.permute.xlu0 %694
        %696 = vrot.lane.b32.xlu0 %v629, 8
        %v697 = vpop.permute.xlu0 %696
        %698 = vrot.lane.b32.xlu0 %v632, 8
        %v699 = vpop.permute.xlu0 %698
        %700 = vrot.lane.b32.xlu0 %v634, 8
        %v701 = vpop.permute.xlu0 %700
        %702 = vrot.lane.b32.xlu0 %v637, 8
        %v703 = vpop.permute.xlu0 %702
        %704 = vrot.lane.b32.xlu0 %v639, 8
        %v705 = vpop.permute.xlu0 %704
        %706 = vrot.lane.b32.xlu0 %v642, 8
        %v707 = vpop.permute.xlu0 %706
        %708 = vrot.lane.b32.xlu0 %v644, 8
        %v709 = vpop.permute.xlu0 %708
        %710 = vrot.lane.b32.xlu0 %v647, 8
        %v711 = vpop.permute.xlu0 %710
        %712 = vrot.lane.b32.xlu0 %v649, 8
        %v713 = vpop.permute.xlu0 %712
        %748 = vrot.lane.b32.xlu0 %v293, 12
        %v749 = vpop.permute.xlu0 %748
        %750 = vrot.lane.b32.xlu0 %v294, 12
        %v751 = vpop.permute.xlu0 %750
        %752 = vrot.lane.b32.xlu0 %v296, 12
        %v753 = vpop.permute.xlu0 %752
        %754 = vrot.lane.b32.xlu0 %v297, 12
        %v755 = vpop.permute.xlu0 %754
        %756 = vrot.lane.b32.xlu0 %v299, 12
        %v757 = vpop.permute.xlu0 %756
        %758 = vrot.lane.b32.xlu0 %v300, 12
        %v759 = vpop.permute.xlu0 %758
        %760 = vrot.lane.b32.xlu0 %v302, 12
        %v761 = vpop.permute.xlu0 %760
        %762 = vrot.lane.b32.xlu0 %v303, 12
        %v763 = vpop.permute.xlu0 %762
        %764 = vrot.lane.b32.xlu0 %v305, 12
        %v765 = vpop.permute.xlu0 %764
        %766 = vrot.lane.b32.xlu0 %v306, 12
        %v767 = vpop.permute.xlu0 %766
        %768 = vrot.lane.b32.xlu0 %v308, 12
        %v769 = vpop.permute.xlu0 %768
        %770 = vrot.lane.b32.xlu0 %v309, 12
        %v771 = vpop.permute.xlu0 %770
        %772 = vrot.lane.b32.xlu0 %v311, 12
        %v773 = vpop.permute.xlu0 %772
        %774 = vrot.lane.b32.xlu0 %v312, 12
        %v775 = vpop.permute.xlu0 %774
        %776 = vrot.lane.b32.xlu0 %v314, 12
        %v777 = vpop.permute.xlu0 %776
        %778 = vrot.lane.b32.xlu0 %v315, 12
        %v779 = vpop.permute.xlu0 %778
        %780 = vrot.lane.b32.xlu0 %v317, 12
        %v781 = vpop.permute.xlu0 %780
        %782 = vrot.lane.b32.xlu0 %v318, 12
        %v783 = vpop.permute.xlu0 %782
        %784 = vrot.lane.b32.xlu0 %v320, 12
        %v785 = vpop.permute.xlu0 %784
        %786 = vrot.lane.b32.xlu0 %v321, 12
        %v787 = vpop.permute.xlu0 %786
        %788 = vrot.lane.b32.xlu0 %v323, 12
        %v789 = vpop.permute.xlu0 %788
        %790 = vrot.lane.b32.xlu0 %v324, 12
        %v791 = vpop.permute.xlu0 %790
        %792 = vrot.lane.b32.xlu0 %v326, 12
        %v793 = vpop.permute.xlu0 %792
        %794 = vrot.lane.b32.xlu0 %v327, 12
        %v795 = vpop.permute.xlu0 %794
        %796 = vrot.lane.b32.xlu0 %v329, 12
        %v797 = vpop.permute.xlu0 %796
        %798 = vrot.lane.b32.xlu0 %v330, 12
        %v799 = vpop.permute.xlu0 %798
        %800 = vrot.lane.b32.xlu0 %v332, 12
        %v801 = vpop.permute.xlu0 %800
        %802 = vrot.lane.b32.xlu0 %v333, 12
        %v803 = vpop.permute.xlu0 %802
        %804 = vrot.lane.b32.xlu0 %v335, 12
        %v805 = vpop.permute.xlu0 %804
        %806 = vrot.lane.b32.xlu0 %v336, 12
        %v807 = vpop.permute.xlu0 %806
        %808 = vrot.lane.b32.xlu0 %v338, 12
        %v809 = vpop.permute.xlu0 %808
        %810 = vrot.lane.b32.xlu0 %v339, 12
        %v811 = vpop.permute.xlu0 %810
        %v845 = vrot.slane %v338, 1
        %v846 = vrot.slane %v339, 1
        %v847 = vsel %vm392, %v845, %v846
        %v848 = vrot.slane %v340, 1
        %v849 = vsel %vm392, %v846, %v848
        %850 = vrot.lane.b32.xlu0 %v400, 16
        %v851 = vpop.permute.xlu0 %850
        %852 = vrot.lane.b32.xlu0 %v402, 16
        %v853 = vpop.permute.xlu0 %852
        %854 = vrot.lane.b32.xlu0 %v405, 16
        %v855 = vpop.permute.xlu0 %854
        %856 = vrot.lane.b32.xlu0 %v407, 16
        %v857 = vpop.permute.xlu0 %856
        %858 = vrot.lane.b32.xlu0 %v410, 16
        %v859 = vpop.permute.xlu0 %858
        %860 = vrot.lane.b32.xlu0 %v412, 16
        %v861 = vpop.permute.xlu0 %860
        %862 = vrot.lane.b32.xlu0 %v415, 16
        %v863 = vpop.permute.xlu0 %862
        %864 = vrot.lane.b32.xlu0 %v417, 16
        %v865 = vpop.permute.xlu0 %864
        %866 = vrot.lane.b32.xlu0 %v420, 16
        %v867 = vpop.permute.xlu0 %866
        %868 = vrot.lane.b32.xlu0 %v422, 16
        %v869 = vpop.permute.xlu0 %868
        %870 = vrot.lane.b32.xlu0 %v425, 16
        %v871 = vpop.permute.xlu0 %870
        %872 = vrot.lane.b32.xlu0 %v427, 16
        %v873 = vpop.permute.xlu0 %872
        %874 = vrot.lane.b32.xlu0 %v430, 16
        %v875 = vpop.permute.xlu0 %874
        %876 = vrot.lane.b32.xlu0 %v432, 16
        %v877 = vpop.permute.xlu0 %876
        %878 = vrot.lane.b32.xlu0 %v435, 16
        %v879 = vpop.permute.xlu0 %878
        %880 = vrot.lane.b32.xlu0 %v437, 16
        %v881 = vpop.permute.xlu0 %880
        %882 = vrot.lane.b32.xlu0 %v440, 16
        %v883 = vpop.permute.xlu0 %882
        %884 = vrot.lane.b32.xlu0 %v442, 16
        %v885 = vpop.permute.xlu0 %884
        %886 = vrot.lane.b32.xlu0 %v445, 16
        %v887 = vpop.permute.xlu0 %886
        %888 = vrot.lane.b32.xlu0 %v447, 16
        %v889 = vpop.permute.xlu0 %888
        %890 = vrot.lane.b32.xlu0 %v450, 16
        %v891 = vpop.permute.xlu0 %890
        %892 = vrot.lane.b32.xlu0 %v452, 16
        %v893 = vpop.permute.xlu0 %892
        %894 = vrot.lane.b32.xlu0 %v455, 16
        %v895 = vpop.permute.xlu0 %894
        %896 = vrot.lane.b32.xlu0 %v457, 16
        %v897 = vpop.permute.xlu0 %896
        %898 = vrot.lane.b32.xlu0 %v460, 16
        %v899 = vpop.permute.xlu0 %898
        %900 = vrot.lane.b32.xlu0 %v462, 16
        %v901 = vpop.permute.xlu0 %900
        %902 = vrot.lane.b32.xlu0 %v465, 16
        %v903 = vpop.permute.xlu0 %902
        %904 = vrot.lane.b32.xlu0 %v467, 16
        %v905 = vpop.permute.xlu0 %904
        %906 = vrot.lane.b32.xlu0 %v470, 16
        %v907 = vpop.permute.xlu0 %906
        %908 = vrot.lane.b32.xlu0 %v472, 16
        %v909 = vpop.permute.xlu0 %908
        %910 = vrot.lane.b32.xlu0 %v847, 16
        %v911 = vpop.permute.xlu0 %910
        %912 = vrot.lane.b32.xlu0 %v849, 16
        %v913 = vpop.permute.xlu0 %912
        %v946 = vrot.slane %v338, 2
        %v947 = vrot.slane %v339, 2
        %v948 = vsel %vm569, %v946, %v947
        %v949 = vrot.slane %v340, 2
        %v950 = vsel %vm569, %v947, %v949
        %951 = vrot.lane.b32.xlu0 %v577, 20
        %v952 = vpop.permute.xlu0 %951
        %953 = vrot.lane.b32.xlu0 %v579, 20
        %v954 = vpop.permute.xlu0 %953
        %955 = vrot.lane.b32.xlu0 %v582, 20
        %v956 = vpop.permute.xlu0 %955
        %957 = vrot.lane.b32.xlu0 %v584, 20
        %v958 = vpop.permute.xlu0 %957
        %959 = vrot.lane.b32.xlu0 %v587, 20
        %v960 = vpop.permute.xlu0 %959
        %961 = vrot.lane.b32.xlu0 %v589, 20
        %v962 = vpop.permute.xlu0 %961
        %963 = vrot.lane.b32.xlu0 %v592, 20
        %v964 = vpop.permute.xlu0 %963
        %965 = vrot.lane.b32.xlu0 %v594, 20
        %v966 = vpop.permute.xlu0 %965
        %967 = vrot.lane.b32.xlu0 %v597, 20
        %v968 = vpop.permute.xlu0 %967
        %969 = vrot.lane.b32.xlu0 %v599, 20
        %v970 = vpop.permute.xlu0 %969
        %971 = vrot.lane.b32.xlu0 %v602, 20
        %v972 = vpop.permute.xlu0 %971
        %973 = vrot.lane.b32.xlu0 %v604, 20
        %v974 = vpop.permute.xlu0 %973
        %975 = vrot.lane.b32.xlu0 %v607, 20
        %v976 = vpop.permute.xlu0 %975
        %977 = vrot.lane.b32.xlu0 %v609, 20
        %v978 = vpop.permute.xlu0 %977
        %979 = vrot.lane.b32.xlu0 %v612, 20
        %v980 = vpop.permute.xlu0 %979
        %981 = vrot.lane.b32.xlu0 %v614, 20
        %v982 = vpop.permute.xlu0 %981
        %983 = vrot.lane.b32.xlu0 %v617, 20
        %v984 = vpop.permute.xlu0 %983
        %985 = vrot.lane.b32.xlu0 %v619, 20
        %v986 = vpop.permute.xlu0 %985
        %987 = vrot.lane.b32.xlu0 %v622, 20
        %v988 = vpop.permute.xlu0 %987
        %989 = vrot.lane.b32.xlu0 %v624, 20
        %v990 = vpop.permute.xlu0 %989
        %991 = vrot.lane.b32.xlu0 %v627, 20
        %v992 = vpop.permute.xlu0 %991
        %993 = vrot.lane.b32.xlu0 %v629, 20
        %v994 = vpop.permute.xlu0 %993
        %995 = vrot.lane.b32.xlu0 %v632, 20
        %v996 = vpop.permute.xlu0 %995
        %997 = vrot.lane.b32.xlu0 %v634, 20
        %v998 = vpop.permute.xlu0 %997
        %999 = vrot.lane.b32.xlu0 %v637, 20
        %v1000 = vpop.permute.xlu0 %999
        %1001 = vrot.lane.b32.xlu0 %v639, 20
        %v1002 = vpop.permute.xlu0 %1001
        %1003 = vrot.lane.b32.xlu0 %v642, 20
        %v1004 = vpop.permute.xlu0 %1003
        %1005 = vrot.lane.b32.xlu0 %v644, 20
        %v1006 = vpop.permute.xlu0 %1005
        %1007 = vrot.lane.b32.xlu0 %v647, 20
        %v1008 = vpop.permute.xlu0 %1007
        %1009 = vrot.lane.b32.xlu0 %v649, 20
        %v1010 = vpop.permute.xlu0 %1009
        %1011 = vrot.lane.b32.xlu0 %v948, 20
        %v1012 = vpop.permute.xlu0 %1011
        %1013 = vrot.lane.b32.xlu0 %v950, 20
        %v1014 = vpop.permute.xlu0 %1013
        %1049 = vrot.lane.b32.xlu0 %v296, 24
        %v1050 = vpop.permute.xlu0 %1049
        %1051 = vrot.lane.b32.xlu0 %v297, 24
        %v1052 = vpop.permute.xlu0 %1051
        %1053 = vrot.lane.b32.xlu0 %v299, 24
        %v1054 = vpop.permute.xlu0 %1053
        %1055 = vrot.lane.b32.xlu0 %v300, 24
        %v1056 = vpop.permute.xlu0 %1055
        %1057 = vrot.lane.b32.xlu0 %v302, 24
        %v1058 = vpop.permute.xlu0 %1057
        %1059 = vrot.lane.b32.xlu0 %v303, 24
        %v1060 = vpop.permute.xlu0 %1059
        %1061 = vrot.lane.b32.xlu0 %v305, 24
        %v1062 = vpop.permute.xlu0 %1061
        %1063 = vrot.lane.b32.xlu0 %v306, 24
        %v1064 = vpop.permute.xlu0 %1063
        %1065 = vrot.lane.b32.xlu0 %v308, 24
        %v1066 = vpop.permute.xlu0 %1065
        %1067 = vrot.lane.b32.xlu0 %v309, 24
        %v1068 = vpop.permute.xlu0 %1067
        %1069 = vrot.lane.b32.xlu0 %v311, 24
        %v1070 = vpop.permute.xlu0 %1069
        %1071 = vrot.lane.b32.xlu0 %v312, 24
        %v1072 = vpop.permute.xlu0 %1071
        %1073 = vrot.lane.b32.xlu0 %v314, 24
        %v1074 = vpop.permute.xlu0 %1073
        %1075 = vrot.lane.b32.xlu0 %v315, 24
        %v1076 = vpop.permute.xlu0 %1075
        %1077 = vrot.lane.b32.xlu0 %v317, 24
        %v1078 = vpop.permute.xlu0 %1077
        %1079 = vrot.lane.b32.xlu0 %v318, 24
        %v1080 = vpop.permute.xlu0 %1079
        %1081 = vrot.lane.b32.xlu0 %v320, 24
        %v1082 = vpop.permute.xlu0 %1081
        %1083 = vrot.lane.b32.xlu0 %v321, 24
        %v1084 = vpop.permute.xlu0 %1083
        %1085 = vrot.lane.b32.xlu0 %v323, 24
        %v1086 = vpop.permute.xlu0 %1085
        %1087 = vrot.lane.b32.xlu0 %v324, 24
        %v1088 = vpop.permute.xlu0 %1087
        %1089 = vrot.lane.b32.xlu0 %v326, 24
        %v1090 = vpop.permute.xlu0 %1089
        %1091 = vrot.lane.b32.xlu0 %v327, 24
        %v1092 = vpop.permute.xlu0 %1091
        %1093 = vrot.lane.b32.xlu0 %v329, 24
        %v1094 = vpop.permute.xlu0 %1093
        %1095 = vrot.lane.b32.xlu0 %v330, 24
        %v1096 = vpop.permute.xlu0 %1095
        %1097 = vrot.lane.b32.xlu0 %v332, 24
        %v1098 = vpop.permute.xlu0 %1097
        %1099 = vrot.lane.b32.xlu0 %v333, 24
        %v1100 = vpop.permute.xlu0 %1099
        %1101 = vrot.lane.b32.xlu0 %v335, 24
        %v1102 = vpop.permute.xlu0 %1101
        %1103 = vrot.lane.b32.xlu0 %v336, 24
        %v1104 = vpop.permute.xlu0 %1103
        %1105 = vrot.lane.b32.xlu0 %v338, 24
        %v1106 = vpop.permute.xlu0 %1105
        %1107 = vrot.lane.b32.xlu0 %v339, 24
        %v1108 = vpop.permute.xlu0 %1107
        %1109 = vrot.lane.b32.xlu0 %v341, 24
        %v1110 = vpop.permute.xlu0 %1109
        %1111 = vrot.lane.b32.xlu0 %v342, 24
        %v1112 = vpop.permute.xlu0 %1111
        %v1146 = vrot.slane %v341, 1
        %v1147 = vrot.slane %v342, 1
        %v1148 = vsel %vm392, %v1146, %v1147
        %v1149 = vrot.slane %v343, 1
        %v1150 = vsel %vm392, %v1147, %v1149
        %1151 = vrot.lane.b32.xlu0 %v405, 28
        %v1152 = vpop.permute.xlu0 %1151
        %1153 = vrot.lane.b32.xlu0 %v407, 28
        %v1154 = vpop.permute.xlu0 %1153
        %1155 = vrot.lane.b32.xlu0 %v410, 28
        %v1156 = vpop.permute.xlu0 %1155
        %1157 = vrot.lane.b32.xlu0 %v412, 28
        %v1158 = vpop.permute.xlu0 %1157
        %1159 = vrot.lane.b32.xlu0 %v415, 28
        %v1160 = vpop.permute.xlu0 %1159
        %1161 = vrot.lane.b32.xlu0 %v417, 28
        %v1162 = vpop.permute.xlu0 %1161
        %1163 = vrot.lane.b32.xlu0 %v420, 28
        %v1164 = vpop.permute.xlu0 %1163
        %1165 = vrot.lane.b32.xlu0 %v422, 28
        %v1166 = vpop.permute.xlu0 %1165
        %1167 = vrot.lane.b32.xlu0 %v425, 28
        %v1168 = vpop.permute.xlu0 %1167
        %1169 = vrot.lane.b32.xlu0 %v427, 28
        %v1170 = vpop.permute.xlu0 %1169
        %1171 = vrot.lane.b32.xlu0 %v430, 28
        %v1172 = vpop.permute.xlu0 %1171
        %1173 = vrot.lane.b32.xlu0 %v432, 28
        %v1174 = vpop.permute.xlu0 %1173
        %1175 = vrot.lane.b32.xlu0 %v435, 28
        %v1176 = vpop.permute.xlu0 %1175
        %1177 = vrot.lane.b32.xlu0 %v437, 28
        %v1178 = vpop.permute.xlu0 %1177
        %1179 = vrot.lane.b32.xlu0 %v440, 28
        %v1180 = vpop.permute.xlu0 %1179
        %1181 = vrot.lane.b32.xlu0 %v442, 28
        %v1182 = vpop.permute.xlu0 %1181
        %1183 = vrot.lane.b32.xlu0 %v445, 28
        %v1184 = vpop.permute.xlu0 %1183
        %1185 = vrot.lane.b32.xlu0 %v447, 28
        %v1186 = vpop.permute.xlu0 %1185
        %1187 = vrot.lane.b32.xlu0 %v450, 28
        %v1188 = vpop.permute.xlu0 %1187
        %1189 = vrot.lane.b32.xlu0 %v452, 28
        %v1190 = vpop.permute.xlu0 %1189
        %1191 = vrot.lane.b32.xlu0 %v455, 28
        %v1192 = vpop.permute.xlu0 %1191
        %1193 = vrot.lane.b32.xlu0 %v457, 28
        %v1194 = vpop.permute.xlu0 %1193
        %1195 = vrot.lane.b32.xlu0 %v460, 28
        %v1196 = vpop.permute.xlu0 %1195
        %1197 = vrot.lane.b32.xlu0 %v462, 28
        %v1198 = vpop.permute.xlu0 %1197
        %1199 = vrot.lane.b32.xlu0 %v465, 28
        %v1200 = vpop.permute.xlu0 %1199
        %1201 = vrot.lane.b32.xlu0 %v467, 28
        %v1202 = vpop.permute.xlu0 %1201
        %1203 = vrot.lane.b32.xlu0 %v470, 28
        %v1204 = vpop.permute.xlu0 %1203
        %1205 = vrot.lane.b32.xlu0 %v472, 28
        %v1206 = vpop.permute.xlu0 %1205
        %1207 = vrot.lane.b32.xlu0 %v847, 28
        %v1208 = vpop.permute.xlu0 %1207
        %1209 = vrot.lane.b32.xlu0 %v849, 28
        %v1210 = vpop.permute.xlu0 %1209
        %1211 = vrot.lane.b32.xlu0 %v1148, 28
        %v1212 = vpop.permute.xlu0 %1211
        %1213 = vrot.lane.b32.xlu0 %v1150, 28
        %v1214 = vpop.permute.xlu0 %1213
        %v1247 = vrot.slane %v341, 2
        %v1248 = vrot.slane %v342, 2
        %v1249 = vsel %vm569, %v1247, %v1248
        %v1250 = vrot.slane %v343, 2
        %v1251 = vsel %vm569, %v1248, %v1250
        %1252 = vrot.lane.b32.xlu0 %v582, 32
        %v1253 = vpop.permute.xlu0 %1252
        %1254 = vrot.lane.b32.xlu0 %v584, 32
        %v1255 = vpop.permute.xlu0 %1254
        %1256 = vrot.lane.b32.xlu0 %v587, 32
        %v1257 = vpop.permute.xlu0 %1256
        %1258 = vrot.lane.b32.xlu0 %v589, 32
        %v1259 = vpop.permute.xlu0 %1258
        %1260 = vrot.lane.b32.xlu0 %v592, 32
        %v1261 = vpop.permute.xlu0 %1260
        %1262 = vrot.lane.b32.xlu0 %v594, 32
        %v1263 = vpop.permute.xlu0 %1262
        %1264 = vrot.lane.b32.xlu0 %v597, 32
        %v1265 = vpop.permute.xlu0 %1264
        %1266 = vrot.lane.b32.xlu0 %v599, 32
        %v1267 = vpop.permute.xlu0 %1266
        %1268 = vrot.lane.b32.xlu0 %v602, 32
        %v1269 = vpop.permute.xlu0 %1268
        %1270 = vrot.lane.b32.xlu0 %v604, 32
        %v1271 = vpop.permute.xlu0 %1270
        %1272 = vrot.lane.b32.xlu0 %v607, 32
        %v1273 = vpop.permute.xlu0 %1272
        %1274 = vrot.lane.b32.xlu0 %v609, 32
        %v1275 = vpop.permute.xlu0 %1274
        %1276 = vrot.lane.b32.xlu0 %v612, 32
        %v1277 = vpop.permute.xlu0 %1276
        %1278 = vrot.lane.b32.xlu0 %v614, 32
        %v1279 = vpop.permute.xlu0 %1278
        %1280 = vrot.lane.b32.xlu0 %v617, 32
        %v1281 = vpop.permute.xlu0 %1280
        %1282 = vrot.lane.b32.xlu0 %v619, 32
        %v1283 = vpop.permute.xlu0 %1282
        %1284 = vrot.lane.b32.xlu0 %v622, 32
        %v1285 = vpop.permute.xlu0 %1284
        %1286 = vrot.lane.b32.xlu0 %v624, 32
        %v1287 = vpop.permute.xlu0 %1286
        %1288 = vrot.lane.b32.xlu0 %v627, 32
        %v1289 = vpop.permute.xlu0 %1288
        %1290 = vrot.lane.b32.xlu0 %v629, 32
        %v1291 = vpop.permute.xlu0 %1290
        %1292 = vrot.lane.b32.xlu0 %v632, 32
        %v1293 = vpop.permute.xlu0 %1292
        %1294 = vrot.lane.b32.xlu0 %v634, 32
        %v1295 = vpop.permute.xlu0 %1294
        %1296 = vrot.lane.b32.xlu0 %v637, 32
        %v1297 = vpop.permute.xlu0 %1296
        %1298 = vrot.lane.b32.xlu0 %v639, 32
        %v1299 = vpop.permute.xlu0 %1298
        %1300 = vrot.lane.b32.xlu0 %v642, 32
        %v1301 = vpop.permute.xlu0 %1300
        %1302 = vrot.lane.b32.xlu0 %v644, 32
        %v1303 = vpop.permute.xlu0 %1302
        %1304 = vrot.lane.b32.xlu0 %v647, 32
        %v1305 = vpop.permute.xlu0 %1304
        %1306 = vrot.lane.b32.xlu0 %v649, 32
        %v1307 = vpop.permute.xlu0 %1306
        %1308 = vrot.lane.b32.xlu0 %v948, 32
        %v1309 = vpop.permute.xlu0 %1308
        %1310 = vrot.lane.b32.xlu0 %v950, 32
        %v1311 = vpop.permute.xlu0 %1310
        %1312 = vrot.lane.b32.xlu0 %v1249, 32
        %v1313 = vpop.permute.xlu0 %1312
        %1314 = vrot.lane.b32.xlu0 %v1251, 32
        %v1315 = vpop.permute.xlu0 %1314
        %v1348 = vsel %vm169, %v290, %v474
        %v1349 = vsel %vm169, %v291, %v476
        %v1350 = vsel %vm169, %v293, %v478
        %v1351 = vsel %vm169, %v294, %v480
        %v1352 = vsel %vm169, %v296, %v482
        %v1353 = vsel %vm169, %v297, %v484
        %v1354 = vsel %vm169, %v299, %v486
        %v1355 = vsel %vm169, %v300, %v488
        %v1356 = vsel %vm169, %v302, %v490
        %v1357 = vsel %vm169, %v303, %v492
        %v1358 = vsel %vm169, %v305, %v494
        %v1359 = vsel %vm169, %v306, %v496
        %v1360 = vsel %vm169, %v308, %v498
        %v1361 = vsel %vm169, %v309, %v500
        %v1362 = vsel %vm169, %v311, %v502
        %v1363 = vsel %vm169, %v312, %v504
        %v1364 = vsel %vm169, %v314, %v506
        %v1365 = vsel %vm169, %v315, %v508
        %v1366 = vsel %vm169, %v317, %v510
        %v1367 = vsel %vm169, %v318, %v512
        %v1368 = vsel %vm169, %v320, %v514
        %v1369 = vsel %vm169, %v321, %v516
        %v1370 = vsel %vm169, %v323, %v518
        %v1371 = vsel %vm169, %v324, %v520
        %v1372 = vsel %vm169, %v326, %v522
        %v1373 = vsel %vm169, %v327, %v524
        %v1374 = vsel %vm169, %v329, %v526
        %v1375 = vsel %vm169, %v330, %v528
        %v1376 = vsel %vm169, %v332, %v530
        %v1377 = vsel %vm169, %v333, %v532
        %v1378 = vsel %vm169, %v335, %v534
        %v1379 = vsel %vm169, %v336, %v536
        %vm1380 = vcmask 64512
        %v1381 = vsel %vm1380, %v1348, %v651
        %v1382 = vsel %vm1380, %v1349, %v653
        %v1383 = vsel %vm1380, %v1350, %v655
        %v1384 = vsel %vm1380, %v1351, %v657
        %v1385 = vsel %vm1380, %v1352, %v659
        %v1386 = vsel %vm1380, %v1353, %v661
        %v1387 = vsel %vm1380, %v1354, %v663
        %v1388 = vsel %vm1380, %v1355, %v665
        %v1389 = vsel %vm1380, %v1356, %v667
        %v1390 = vsel %vm1380, %v1357, %v669
        %v1391 = vsel %vm1380, %v1358, %v671
        %v1392 = vsel %vm1380, %v1359, %v673
        %v1393 = vsel %vm1380, %v1360, %v675
        %v1394 = vsel %vm1380, %v1361, %v677
        %v1395 = vsel %vm1380, %v1362, %v679
        %v1396 = vsel %vm1380, %v1363, %v681
        %v1397 = vsel %vm1380, %v1364, %v683
        %v1398 = vsel %vm1380, %v1365, %v685
        %v1399 = vsel %vm1380, %v1366, %v687
        %v1400 = vsel %vm1380, %v1367, %v689
        %v1401 = vsel %vm1380, %v1368, %v691
        %v1402 = vsel %vm1380, %v1369, %v693
        %v1403 = vsel %vm1380, %v1370, %v695
        %v1404 = vsel %vm1380, %v1371, %v697
        %v1405 = vsel %vm1380, %v1372, %v699
        %v1406 = vsel %vm1380, %v1373, %v701
        %v1407 = vsel %vm1380, %v1374, %v703
        %v1408 = vsel %vm1380, %v1375, %v705
        %v1409 = vsel %vm1380, %v1376, %v707
        %v1410 = vsel %vm1380, %v1377, %v709
        %v1411 = vsel %vm1380, %v1378, %v711
        %v1412 = vsel %vm1380, %v1379, %v713
        %vm1413 = vcmask 97280
        %v1414 = vsel %vm1413, %v1381, %v749
        %v1415 = vsel %vm1413, %v1382, %v751
        %v1416 = vsel %vm1413, %v1383, %v753
        %v1417 = vsel %vm1413, %v1384, %v755
        %v1418 = vsel %vm1413, %v1385, %v757
        %v1419 = vsel %vm1413, %v1386, %v759
        %v1420 = vsel %vm1413, %v1387, %v761
        %v1421 = vsel %vm1413, %v1388, %v763
        %v1422 = vsel %vm1413, %v1389, %v765
        %v1423 = vsel %vm1413, %v1390, %v767
        %v1424 = vsel %vm1413, %v1391, %v769
        %v1425 = vsel %vm1413, %v1392, %v771
        %v1426 = vsel %vm1413, %v1393, %v773
        %v1427 = vsel %vm1413, %v1394, %v775
        %v1428 = vsel %vm1413, %v1395, %v777
        %v1429 = vsel %vm1413, %v1396, %v779
        %v1430 = vsel %vm1413, %v1397, %v781
        %v1431 = vsel %vm1413, %v1398, %v783
        %v1432 = vsel %vm1413, %v1399, %v785
        %v1433 = vsel %vm1413, %v1400, %v787
        %v1434 = vsel %vm1413, %v1401, %v789
        %v1435 = vsel %vm1413, %v1402, %v791
        %v1436 = vsel %vm1413, %v1403, %v793
        %v1437 = vsel %vm1413, %v1404, %v795
        %v1438 = vsel %vm1413, %v1405, %v797
        %v1439 = vsel %vm1413, %v1406, %v799
        %v1440 = vsel %vm1413, %v1407, %v801
        %v1441 = vsel %vm1413, %v1408, %v803
        %v1442 = vsel %vm1413, %v1409, %v805
        %v1443 = vsel %vm1413, %v1410, %v807
        %v1444 = vsel %vm1413, %v1411, %v809
        %v1445 = vsel %vm1413, %v1412, %v811
        %vm1446 = vcmask 130048
        %v1447 = vsel %vm1446, %v1414, %v851
        %v1448 = vsel %vm1446, %v1415, %v853
        %v1449 = vsel %vm1446, %v1416, %v855
        %v1450 = vsel %vm1446, %v1417, %v857
        %v1451 = vsel %vm1446, %v1418, %v859
        %v1452 = vsel %vm1446, %v1419, %v861
        %v1453 = vsel %vm1446, %v1420, %v863
        %v1454 = vsel %vm1446, %v1421, %v865
        %v1455 = vsel %vm1446, %v1422, %v867
        %v1456 = vsel %vm1446, %v1423, %v869
        %v1457 = vsel %vm1446, %v1424, %v871
        %v1458 = vsel %vm1446, %v1425, %v873
        %v1459 = vsel %vm1446, %v1426, %v875
        %v1460 = vsel %vm1446, %v1427, %v877
        %v1461 = vsel %vm1446, %v1428, %v879
        %v1462 = vsel %vm1446, %v1429, %v881
        %v1463 = vsel %vm1446, %v1430, %v883
        %v1464 = vsel %vm1446, %v1431, %v885
        %v1465 = vsel %vm1446, %v1432, %v887
        %v1466 = vsel %vm1446, %v1433, %v889
        %v1467 = vsel %vm1446, %v1434, %v891
        %v1468 = vsel %vm1446, %v1435, %v893
        %v1469 = vsel %vm1446, %v1436, %v895
        %v1470 = vsel %vm1446, %v1437, %v897
        %v1471 = vsel %vm1446, %v1438, %v899
        %v1472 = vsel %vm1446, %v1439, %v901
        %v1473 = vsel %vm1446, %v1440, %v903
        %v1474 = vsel %vm1446, %v1441, %v905
        %v1475 = vsel %vm1446, %v1442, %v907
        %v1476 = vsel %vm1446, %v1443, %v909
        %v1477 = vsel %vm1446, %v1444, %v911
        %v1478 = vsel %vm1446, %v1445, %v913
        %vm1479 = vcmask 162816
        %v1480 = vsel %vm1479, %v1447, %v952
        %v1481 = vsel %vm1479, %v1448, %v954
        %v1482 = vsel %vm1479, %v1449, %v956
        %v1483 = vsel %vm1479, %v1450, %v958
        %v1484 = vsel %vm1479, %v1451, %v960
        %v1485 = vsel %vm1479, %v1452, %v962
        %v1486 = vsel %vm1479, %v1453, %v964
        %v1487 = vsel %vm1479, %v1454, %v966
        %v1488 = vsel %vm1479, %v1455, %v968
        %v1489 = vsel %vm1479, %v1456, %v970
        %v1490 = vsel %vm1479, %v1457, %v972
        %v1491 = vsel %vm1479, %v1458, %v974
        %v1492 = vsel %vm1479, %v1459, %v976
        %v1493 = vsel %vm1479, %v1460, %v978
        %v1494 = vsel %vm1479, %v1461, %v980
        %v1495 = vsel %vm1479, %v1462, %v982
        %v1496 = vsel %vm1479, %v1463, %v984
        %v1497 = vsel %vm1479, %v1464, %v986
        %v1498 = vsel %vm1479, %v1465, %v988
        %v1499 = vsel %vm1479, %v1466, %v990
        %v1500 = vsel %vm1479, %v1467, %v992
        %v1501 = vsel %vm1479, %v1468, %v994
        %v1502 = vsel %vm1479, %v1469, %v996
        %v1503 = vsel %vm1479, %v1470, %v998
        %v1504 = vsel %vm1479, %v1471, %v1000
        %v1505 = vsel %vm1479, %v1472, %v1002
        %v1506 = vsel %vm1479, %v1473, %v1004
        %v1507 = vsel %vm1479, %v1474, %v1006
        %v1508 = vsel %vm1479, %v1475, %v1008
        %v1509 = vsel %vm1479, %v1476, %v1010
        %v1510 = vsel %vm1479, %v1477, %v1012
        %v1511 = vsel %vm1479, %v1478, %v1014
        %vm1512 = vcmask 195584
        %v1513 = vsel %vm1512, %v1480, %v1050
        %v1514 = vsel %vm1512, %v1481, %v1052
        %v1515 = vsel %vm1512, %v1482, %v1054
        %v1516 = vsel %vm1512, %v1483, %v1056
        %v1517 = vsel %vm1512, %v1484, %v1058
        %v1518 = vsel %vm1512, %v1485, %v1060
        %v1519 = vsel %vm1512, %v1486, %v1062
        %v1520 = vsel %vm1512, %v1487, %v1064
        %v1521 = vsel %vm1512, %v1488, %v1066
        %v1522 = vsel %vm1512, %v1489, %v1068
        %v1523 = vsel %vm1512, %v1490, %v1070
        %v1524 = vsel %vm1512, %v1491, %v1072
        %v1525 = vsel %vm1512, %v1492, %v1074
        %v1526 = vsel %vm1512, %v1493, %v1076
        %v1527 = vsel %vm1512, %v1494, %v1078
        %v1528 = vsel %vm1512, %v1495, %v1080
        %v1529 = vsel %vm1512, %v1496, %v1082
        %v1530 = vsel %vm1512, %v1497, %v1084
        %v1531 = vsel %vm1512, %v1498, %v1086
        %v1532 = vsel %vm1512, %v1499, %v1088
        %v1533 = vsel %vm1512, %v1500, %v1090
        %v1534 = vsel %vm1512, %v1501, %v1092
        %v1535 = vsel %vm1512, %v1502, %v1094
        %v1536 = vsel %vm1512, %v1503, %v1096
        %v1537 = vsel %vm1512, %v1504, %v1098
        %v1538 = vsel %vm1512, %v1505, %v1100
        %v1539 = vsel %vm1512, %v1506, %v1102
        %v1540 = vsel %vm1512, %v1507, %v1104
        %v1541 = vsel %vm1512, %v1508, %v1106
        %v1542 = vsel %vm1512, %v1509, %v1108
        %v1543 = vsel %vm1512, %v1510, %v1110
        %v1544 = vsel %vm1512, %v1511, %v1112
        %vm1545 = vcmask 228352
        %v1546 = vsel %vm1545, %v1513, %v1152
        %v1547 = vsel %vm1545, %v1514, %v1154
        %v1548 = vsel %vm1545, %v1515, %v1156
        %v1549 = vsel %vm1545, %v1516, %v1158
        %v1550 = vsel %vm1545, %v1517, %v1160
        %v1551 = vsel %vm1545, %v1518, %v1162
        %v1552 = vsel %vm1545, %v1519, %v1164
        %v1553 = vsel %vm1545, %v1520, %v1166
        %v1554 = vsel %vm1545, %v1521, %v1168
        %v1555 = vsel %vm1545, %v1522, %v1170
        %v1556 = vsel %vm1545, %v1523, %v1172
        %v1557 = vsel %vm1545, %v1524, %v1174
        %v1558 = vsel %vm1545, %v1525, %v1176
        %v1559 = vsel %vm1545, %v1526, %v1178
        %v1560 = vsel %vm1545, %v1527, %v1180
        %v1561 = vsel %vm1545, %v1528, %v1182
        %v1562 = vsel %vm1545, %v1529, %v1184
        %v1563 = vsel %vm1545, %v1530, %v1186
        %v1564 = vsel %vm1545, %v1531, %v1188
        %v1565 = vsel %vm1545, %v1532, %v1190
        %v1566 = vsel %vm1545, %v1533, %v1192
        %v1567 = vsel %vm1545, %v1534, %v1194
        %v1568 = vsel %vm1545, %v1535, %v1196
        %v1569 = vsel %vm1545, %v1536, %v1198
        %v1570 = vsel %vm1545, %v1537, %v1200
        %v1571 = vsel %vm1545, %v1538, %v1202
        %v1572 = vsel %vm1545, %v1539, %v1204
        %v1573 = vsel %vm1545, %v1540, %v1206
        %v1574 = vsel %vm1545, %v1541, %v1208
        %v1575 = vsel %vm1545, %v1542, %v1210
        %v1576 = vsel %vm1545, %v1543, %v1212
        %v1577 = vsel %vm1545, %v1544, %v1214
        %vm1578 = vcmask 261120
        %v1579 = vsel %vm1578, %v1546, %v1253
        %v1580 = vsel %vm1578, %v1547, %v1255
        %v1581 = vsel %vm1578, %v1548, %v1257
        %v1582 = vsel %vm1578, %v1549, %v1259
        %v1583 = vsel %vm1578, %v1550, %v1261
        %v1584 = vsel %vm1578, %v1551, %v1263
        %v1585 = vsel %vm1578, %v1552, %v1265
        %v1586 = vsel %vm1578, %v1553, %v1267
        %v1587 = vsel %vm1578, %v1554, %v1269
        %v1588 = vsel %vm1578, %v1555, %v1271
        %v1589 = vsel %vm1578, %v1556, %v1273
        %v1590 = vsel %vm1578, %v1557, %v1275
        %v1591 = vsel %vm1578, %v1558, %v1277
        %v1592 = vsel %vm1578, %v1559, %v1279
        %v1593 = vsel %vm1578, %v1560, %v1281
        %v1594 = vsel %vm1578, %v1561, %v1283
        %v1595 = vsel %vm1578, %v1562, %v1285
        %v1596 = vsel %vm1578, %v1563, %v1287
        %v1597 = vsel %vm1578, %v1564, %v1289
        %v1598 = vsel %vm1578, %v1565, %v1291
        %v1599 = vsel %vm1578, %v1566, %v1293
        %v1600 = vsel %vm1578, %v1567, %v1295
        %v1601 = vsel %vm1578, %v1568, %v1297
        %v1602 = vsel %vm1578, %v1569, %v1299
        %v1603 = vsel %vm1578, %v1570, %v1301
        %v1604 = vsel %vm1578, %v1571, %v1303
        %v1605 = vsel %vm1578, %v1572, %v1305
        %v1606 = vsel %vm1578, %v1573, %v1307
        %v1607 = vsel %vm1578, %v1574, %v1309
        %v1608 = vsel %vm1578, %v1575, %v1311
        %v1609 = vsel %vm1578, %v1576, %v1313
        %v1610 = vsel %vm1578, %v1577, %v1315
        %v1611 = vld [vmem:[%s1] sm:$0xff]
        %v1612 = vld [vmem:[%s1 + $0x8] sm:$0xff]
        %v1613 = vld [vmem:[%s1 + $0x10] sm:$0xff]
        %v1614 = vld [vmem:[%s1 + $0x18] sm:$0xff]
        %v1615 = vld [vmem:[%s1 + $0x20] sm:$0xf]
        %v1616 = vld [vmem:[%s2] sm:$0x1]
        %v1618 = vlaneseq
        %v1619 = vshrl.u32 %v1618, 7
        %v1620 = vsub.s32 0, %v1619
        %v1621 = vrot.slane %v1616, %v1620
        %vm1623 = vcmask 293888
        %v1625 = vsel %vm1623, %v1579, 0
        %v1628 = vsel %vm1623, %v1580, 0
        %v1631 = vsel %vm1623, %v1581, 0
        %v1634 = vsel %vm1623, %v1582, 0
        %v1637 = vsel %vm1623, %v1583, 0
        %v1640 = vsel %vm1623, %v1584, 0
        %v1643 = vsel %vm1623, %v1585, 0
        %v1646 = vsel %vm1623, %v1586, 0
        %v1649 = vsel %vm1623, %v1587, 0
        %v1652 = vsel %vm1623, %v1588, 0
        %v1655 = vsel %vm1623, %v1589, 0
        %v1658 = vsel %vm1623, %v1590, 0
        %v1661 = vsel %vm1623, %v1591, 0
        %v1664 = vsel %vm1623, %v1592, 0
        %v1667 = vsel %vm1623, %v1593, 0
        %v1670 = vsel %vm1623, %v1594, 0
        %v1673 = vsel %vm1623, %v1595, 0
        %v1676 = vsel %vm1623, %v1596, 0
        %v1679 = vsel %vm1623, %v1597, 0
        %v1682 = vsel %vm1623, %v1598, 0
        %v1685 = vsel %vm1623, %v1599, 0
        %v1688 = vsel %vm1623, %v1600, 0
        %v1691 = vsel %vm1623, %v1601, 0
        %v1694 = vsel %vm1623, %v1602, 0
        %v1697 = vsel %vm1623, %v1603, 0
        %v1700 = vsel %vm1623, %v1604, 0
        %v1703 = vsel %vm1623, %v1605, 0
        %v1706 = vsel %vm1623, %v1606, 0
        %v1709 = vsel %vm1623, %v1607, 0
        %v1712 = vsel %vm1623, %v1608, 0
        %v1715 = vsel %vm1623, %v1609, 0
        %v1718 = vsel %vm1623, %v1610, 0
        %vm1720 = vcmask 1043456
        %v1722 = vsel %vm1720, %v1615, 0
        %1724 = vmatprep.subr.mxu0 0.0
        %1725 = vmatpush1.msra.mxu0 0.0
        %1726 = vmatprep.subr.mxu0 0.0
        %1727 = vmatpush1.msra.mxu0 0.0
        %1728 = vmatprep.subr.mxu0 0.0
        %1729 = vmatpush1.msra.mxu0 0.0
        %1730 = vmatprep.subr.mxu0 0.0
        %1731 = vmatpush1.msra.mxu0 0.0
        %1732 = vmatprep.subr.mxu0 0.0
        %1733 = vmatpush1.msra.mxu0 0.0
        %1734 = vmatprep.subr.mxu0 0.0
        %1735 = vmatpush1.msra.mxu0 0.0
        %1736 = vmatprep.subr.mxu0 0.0
        %1737 = vmatpush1.msra.mxu0 0.0
        %1738 = vmatprep.subr.mxu0 0.0
        %1739 = vmatpush1.msra.mxu0 0.0
        %1740 = vmatprep.subr.mxu0 0.0
        %1741 = vmatpush1.msra.mxu0 0.0
        %1742 = vmatprep.subr.mxu0 0.0
        %1743 = vmatpush1.msra.mxu0 0.0
        %1744 = vmatprep.subr.mxu0 0.0
        %1745 = vmatpush1.msra.mxu0 0.0
        %1746 = vmatprep.subr.mxu0 0.0
        %1747 = vmatpush1.msra.mxu0 %v1722
        %1748 = vmatprep.subr.mxu0 0.0
        %1749 = vmatpush1.msra.mxu0 %v1614
        %1750 = vmatprep.subr.mxu0 0.0
        %1751 = vmatpush1.msra.mxu0 %v1613
        %1752 = vmatprep.subr.mxu0 0.0
        %1753 = vmatpush1.msra.mxu0 %v1612
        %1754 = vmatprep.subr.mxu0 0.0
        %1755 = vmatpush1.msra.mxu0 %v1611
        %1756 = vmatprep.subr.mxu0 0.0
        %1757 = vmatpush2.msra.mxu0 0.0
        %1758 = vmatprep.subr.mxu0 0.0
        %1759 = vmatpush2.msra.mxu0 0.0
        %1760 = vmatprep.subr.mxu0 0.0
        %1761 = vmatpush2.msra.mxu0 0.0
        %1762 = vmatprep.subr.mxu0 0.0
        %1763 = vmatpush2.msra.mxu0 0.0
        %1764 = vmatprep.subr.mxu0 0.0
        %1765 = vmatpush2.msra.mxu0 0.0
        %1766 = vmatprep.subr.mxu0 0.0
        %1767 = vmatpush2.msra.mxu0 0.0
        %1768 = vmatprep.subr.mxu0 0.0
        %1769 = vmatpush2.msra.mxu0 0.0
        %1770 = vmatprep.subr.mxu0 0.0
        %1771 = vmatpush2.msra.mxu0 0.0
        %1772 = vmatprep.subr.mxu0 0.0
        %1773 = vmatpush2.msra.mxu0 0.0
        %1774 = vmatprep.subr.mxu0 0.0
        %1775 = vmatpush2.msra.mxu0 0.0
        %1776 = vmatprep.subr.mxu0 0.0
        %1777 = vmatpush2.msra.mxu0 0.0
        %1778 = vmatprep.subr.mxu0 0.0
        %1779 = vmatpush2.msra.mxu0 0.0
        %1780 = vmatprep.subr.mxu0 0.0
        %1781 = vmatpush2.msra.mxu0 0.0
        %1782 = vmatprep.subr.mxu0 0.0
        %1783 = vmatpush2.msra.mxu0 0.0
        %1784 = vmatprep.subr.mxu0 0.0
        %1785 = vmatpush2.msra.mxu0 0.0
        %1786 = vmatprep.subr.mxu0 0.0
        %1787 = vmatpush2.msra.mxu0 0.0
        %1788 = vmatprep.mubr.f32.mxu0 0.0
        %1789 = vmatmul.mubr.f32.gmra.mxu0 %v1625
        %v1790 = vpop.f32.mrf.mxu0
        %v1791 = vadd.f32 %v1621, %v1790
        %v1792 = vpop.f32.mrf.mxu0
        %1793 = vmatprep.mubr.f32.mxu0 0.0
        %1794 = vmatmul.mubr.f32.gmra.mxu0 %v1628
        %v1795 = vpop.f32.mrf.mxu0
        %v1796 = vadd.f32 %v1621, %v1795
        %v1797 = vpop.f32.mrf.mxu0
        %1798 = vmatprep.mubr.f32.mxu0 0.0
        %1799 = vmatmul.mubr.f32.gmra.mxu0 %v1631
        %v1800 = vpop.f32.mrf.mxu0
        %v1801 = vadd.f32 %v1621, %v1800
        %v1802 = vpop.f32.mrf.mxu0
        %1803 = vmatprep.mubr.f32.mxu0 0.0
        %1804 = vmatmul.mubr.f32.gmra.mxu0 %v1634
        %v1805 = vpop.f32.mrf.mxu0
        %v1806 = vadd.f32 %v1621, %v1805
        %v1807 = vpop.f32.mrf.mxu0
        %1808 = vmatprep.mubr.f32.mxu0 0.0
        %1809 = vmatmul.mubr.f32.gmra.mxu0 %v1637
        %v1810 = vpop.f32.mrf.mxu0
        %v1811 = vadd.f32 %v1621, %v1810
        %v1812 = vpop.f32.mrf.mxu0
        %1813 = vmatprep.mubr.f32.mxu0 0.0
        %1814 = vmatmul.mubr.f32.gmra.mxu0 %v1640
        %v1815 = vpop.f32.mrf.mxu0
        %v1816 = vadd.f32 %v1621, %v1815
        %v1817 = vpop.f32.mrf.mxu0
        %1818 = vmatprep.mubr.f32.mxu0 0.0
        %1819 = vmatmul.mubr.f32.gmra.mxu0 %v1643
        %v1820 = vpop.f32.mrf.mxu0
        %v1821 = vadd.f32 %v1621, %v1820
        %v1822 = vpop.f32.mrf.mxu0
        %1823 = vmatprep.mubr.f32.mxu0 0.0
        %1824 = vmatmul.mubr.f32.gmra.mxu0 %v1646
        %v1825 = vpop.f32.mrf.mxu0
        %v1826 = vadd.f32 %v1621, %v1825
        %v1827 = vpop.f32.mrf.mxu0
        %1828 = vmatprep.mubr.f32.mxu0 0.0
        %1829 = vmatmul.mubr.f32.gmra.mxu0 %v1649
        %v1830 = vpop.f32.mrf.mxu0
        %v1831 = vadd.f32 %v1621, %v1830
        %v1832 = vpop.f32.mrf.mxu0
        %1833 = vmatprep.mubr.f32.mxu0 0.0
        %1834 = vmatmul.mubr.f32.gmra.mxu0 %v1652
        %v1835 = vpop.f32.mrf.mxu0
        %v1836 = vadd.f32 %v1621, %v1835
        %v1837 = vpop.f32.mrf.mxu0
        %1838 = vmatprep.mubr.f32.mxu0 0.0
        %1839 = vmatmul.mubr.f32.gmra.mxu0 %v1655
        %v1840 = vpop.f32.mrf.mxu0
        %v1841 = vadd.f32 %v1621, %v1840
        %v1842 = vpop.f32.mrf.mxu0
        %1843 = vmatprep.mubr.f32.mxu0 0.0
        %1844 = vmatmul.mubr.f32.gmra.mxu0 %v1658
        %v1845 = vpop.f32.mrf.mxu0
        %v1846 = vadd.f32 %v1621, %v1845
        %v1847 = vpop.f32.mrf.mxu0
        %1848 = vmatprep.mubr.f32.mxu0 0.0
        %1849 = vmatmul.mubr.f32.gmra.mxu0 %v1661
        %v1850 = vpop.f32.mrf.mxu0
        %v1851 = vadd.f32 %v1621, %v1850
        %v1852 = vpop.f32.mrf.mxu0
        %1853 = vmatprep.mubr.f32.mxu0 0.0
        %1854 = vmatmul.mubr.f32.gmra.mxu0 %v1664
        %v1855 = vpop.f32.mrf.mxu0
        %v1856 = vadd.f32 %v1621, %v1855
        %v1857 = vpop.f32.mrf.mxu0
        %1858 = vmatprep.mubr.f32.mxu0 0.0
        %1859 = vmatmul.mubr.f32.gmra.mxu0 %v1667
        %v1860 = vpop.f32.mrf.mxu0
        %v1861 = vadd.f32 %v1621, %v1860
        %v1862 = vpop.f32.mrf.mxu0
        %1863 = vmatprep.mubr.f32.mxu0 0.0
        %1864 = vmatmul.mubr.f32.gmra.mxu0 %v1670
        %v1865 = vpop.f32.mrf.mxu0
        %v1866 = vadd.f32 %v1621, %v1865
        %v1867 = vpop.f32.mrf.mxu0
        %1868 = vmatprep.mubr.f32.mxu0 0.0
        %1869 = vmatmul.mubr.f32.gmra.mxu0 %v1673
        %v1870 = vpop.f32.mrf.mxu0
        %v1871 = vadd.f32 %v1621, %v1870
        %v1872 = vpop.f32.mrf.mxu0
        %1873 = vmatprep.mubr.f32.mxu0 0.0
        %1874 = vmatmul.mubr.f32.gmra.mxu0 %v1676
        %v1875 = vpop.f32.mrf.mxu0
        %v1876 = vadd.f32 %v1621, %v1875
        %v1877 = vpop.f32.mrf.mxu0
        %1878 = vmatprep.mubr.f32.mxu0 0.0
        %1879 = vmatmul.mubr.f32.gmra.mxu0 %v1679
        %v1880 = vpop.f32.mrf.mxu0
        %v1881 = vadd.f32 %v1621, %v1880
        %v1882 = vpop.f32.mrf.mxu0
        %1883 = vmatprep.mubr.f32.mxu0 0.0
        %1884 = vmatmul.mubr.f32.gmra.mxu0 %v1682
        %v1885 = vpop.f32.mrf.mxu0
        %v1886 = vadd.f32 %v1621, %v1885
        %v1887 = vpop.f32.mrf.mxu0
        %1888 = vmatprep.mubr.f32.mxu0 0.0
        %1889 = vmatmul.mubr.f32.gmra.mxu0 %v1685
        %v1890 = vpop.f32.mrf.mxu0
        %v1891 = vadd.f32 %v1621, %v1890
        %v1892 = vpop.f32.mrf.mxu0
        %1893 = vmatprep.mubr.f32.mxu0 0.0
        %1894 = vmatmul.mubr.f32.gmra.mxu0 %v1688
        %v1895 = vpop.f32.mrf.mxu0
        %v1896 = vadd.f32 %v1621, %v1895
        %v1897 = vpop.f32.mrf.mxu0
        %1898 = vmatprep.mubr.f32.mxu0 0.0
        %1899 = vmatmul.mubr.f32.gmra.mxu0 %v1691
        %v1900 = vpop.f32.mrf.mxu0
        %v1901 = vadd.f32 %v1621, %v1900
        %v1902 = vpop.f32.mrf.mxu0
        %1903 = vmatprep.mubr.f32.mxu0 0.0
        %1904 = vmatmul.mubr.f32.gmra.mxu0 %v1694
        %v1905 = vpop.f32.mrf.mxu0
        %v1906 = vadd.f32 %v1621, %v1905
        %v1907 = vpop.f32.mrf.mxu0
        %1908 = vmatprep.mubr.f32.mxu0 0.0
        %1909 = vmatmul.mubr.f32.gmra.mxu0 %v1697
        %v1910 = vpop.f32.mrf.mxu0
        %v1911 = vadd.f32 %v1621, %v1910
        %v1912 = vpop.f32.mrf.mxu0
        %1913 = vmatprep.mubr.f32.mxu0 0.0
        %1914 = vmatmul.mubr.f32.gmra.mxu0 %v1700
        %v1915 = vpop.f32.mrf.mxu0
        %v1916 = vadd.f32 %v1621, %v1915
        %v1917 = vpop.f32.mrf.mxu0
        %1918 = vmatprep.mubr.f32.mxu0 0.0
        %1919 = vmatmul.mubr.f32.gmra.mxu0 %v1703
        %v1920 = vpop.f32.mrf.mxu0
        %v1921 = vadd.f32 %v1621, %v1920
        %v1922 = vpop.f32.mrf.mxu0
        %1923 = vmatprep.mubr.f32.mxu0 0.0
        %1924 = vmatmul.mubr.f32.gmra.mxu0 %v1706
        %v1925 = vpop.f32.mrf.mxu0
        %v1926 = vadd.f32 %v1621, %v1925
        %v1927 = vpop.f32.mrf.mxu0
        %1928 = vmatprep.mubr.f32.mxu0 0.0
        %1929 = vmatmul.mubr.f32.gmra.mxu0 %v1709
        %v1930 = vpop.f32.mrf.mxu0
        %v1931 = vadd.f32 %v1621, %v1930
        %v1932 = vpop.f32.mrf.mxu0
        %1933 = vmatprep.mubr.f32.mxu0 0.0
        %1934 = vmatmul.mubr.f32.gmra.mxu0 %v1712
        %v1935 = vpop.f32.mrf.mxu0
        %v1936 = vadd.f32 %v1621, %v1935
        %v1937 = vpop.f32.mrf.mxu0
        %1938 = vmatprep.mubr.f32.mxu0 0.0
        %1939 = vmatmul.mubr.f32.gmra.mxu0 %v1715
        %v1940 = vpop.f32.mrf.mxu0
        %v1941 = vadd.f32 %v1621, %v1940
        %v1942 = vpop.f32.mrf.mxu0
        %1943 = vmatprep.mubr.f32.mxu0 0.0
        %1944 = vmatmul.mubr.f32.gmra.mxu0 %v1718
        %v1945 = vpop.f32.mrf.mxu0
        %v1946 = vadd.f32 %v1621, %v1945
        %v1947 = vpop.f32.mrf.mxu0
        %1948 = vdwg.mxu0
        %v1949 = vmax.f32 %v1791, 0.0
        %v1950 = vmax.f32 %v1796, 0.0
        %v1951 = vmax.f32 %v1801, 0.0
        %v1952 = vmax.f32 %v1806, 0.0
        %v1953 = vmax.f32 %v1811, 0.0
        %v1954 = vmax.f32 %v1816, 0.0
        %v1955 = vmax.f32 %v1821, 0.0
        %v1956 = vmax.f32 %v1826, 0.0
        %v1957 = vmax.f32 %v1831, 0.0
        %v1958 = vmax.f32 %v1836, 0.0
        %v1959 = vmax.f32 %v1841, 0.0
        %v1960 = vmax.f32 %v1846, 0.0
        %v1961 = vmax.f32 %v1851, 0.0
        %v1962 = vmax.f32 %v1856, 0.0
        %v1963 = vmax.f32 %v1861, 0.0
        %v1964 = vmax.f32 %v1866, 0.0
        %v1965 = vmax.f32 %v1871, 0.0
        %v1966 = vmax.f32 %v1876, 0.0
        %v1967 = vmax.f32 %v1881, 0.0
        %v1968 = vmax.f32 %v1886, 0.0
        %v1969 = vmax.f32 %v1891, 0.0
        %v1970 = vmax.f32 %v1896, 0.0
        %v1971 = vmax.f32 %v1901, 0.0
        %v1972 = vmax.f32 %v1906, 0.0
        %v1973 = vmax.f32 %v1911, 0.0
        %v1974 = vmax.f32 %v1916, 0.0
        %v1975 = vmax.f32 %v1921, 0.0
        %v1976 = vmax.f32 %v1926, 0.0
        %v1977 = vmax.f32 %v1931, 0.0
        %v1978 = vmax.f32 %v1936, 0.0
        %v1979 = vmax.f32 %v1941, 0.0
        %v1980 = vmax.f32 %v1946, 0.0
        %v2013 = vcombine.high %v1949, %v1949
        %v2015 = vunpack.c.l.s4 1983009808
        %v2016 = vunpack.c.0.s8 %v2015
        %v2017 = vlaneseq
        %v2018 = vshrl.u32 %v2017, 7
        %v2019 = vsub.s32 %v2016, %v2018
        %v2020 = vrot.slane %v1949, %v2019
        %v2022 = vunpack.c.l.s4 1983009808
        %v2023 = vunpack.c.0.s8 %v2022
        %v2024 = vlaneseq
        %v2025 = vshrl.u32 %v2024, 7
        %v2026 = vsub.s32 %v2023, %v2025
        %v2027 = vrot.slane %v2013, %v2026
        %v2028 = vcombine.high %v2020, %v2020
        %v2029 = vcombine.high %v2027, %v2027
        %v2030 = vcombine.high %v1950, %v1950
        %v2032 = vunpack.c.l.s4 1983009808
        %v2033 = vunpack.c.0.s8 %v2032
        %v2034 = vlaneseq
        %v2035 = vshrl.u32 %v2034, 7
        %v2036 = vsub.s32 %v2033, %v2035
        %v2037 = vrot.slane %v1950, %v2036
        %v2039 = vunpack.c.l.s4 1983009808
        %v2040 = vunpack.c.0.s8 %v2039
        %v2041 = vlaneseq
        %v2042 = vshrl.u32 %v2041, 7
        %v2043 = vsub.s32 %v2040, %v2042
        %v2044 = vrot.slane %v2030, %v2043
        %v2045 = vcombine.high %v2037, %v2037
        %v2046 = vcombine.high %v2044, %v2044
        %v2047 = vcombine.high %v1951, %v1951
        %v2049 = vunpack.c.l.s4 1983009808
        %v2050 = vunpack.c.0.s8 %v2049
        %v2051 = vlaneseq
        %v2052 = vshrl.u32 %v2051, 7
        %v2053 = vsub.s32 %v2050, %v2052
        %v2054 = vrot.slane %v1951, %v2053
        %v2056 = vunpack.c.l.s4 1983009808
        %v2057 = vunpack.c.0.s8 %v2056
        %v2058 = vlaneseq
        %v2059 = vshrl.u32 %v2058, 7
        %v2060 = vsub.s32 %v2057, %v2059
        %v2061 = vrot.slane %v2047, %v2060
        %v2062 = vcombine.high %v2054, %v2054
        %v2063 = vcombine.high %v2061, %v2061
        %v2064 = vcombine.high %v1952, %v1952
        %v2066 = vunpack.c.l.s4 1983009808
        %v2067 = vunpack.c.0.s8 %v2066
        %v2068 = vlaneseq
        %v2069 = vshrl.u32 %v2068, 7
        %v2070 = vsub.s32 %v2067, %v2069
        %v2071 = vrot.slane %v1952, %v2070
        %v2073 = vunpack.c.l.s4 1983009808
        %v2074 = vunpack.c.0.s8 %v2073
        %v2075 = vlaneseq
        %v2076 = vshrl.u32 %v2075, 7
        %v2077 = vsub.s32 %v2074, %v2076
        %v2078 = vrot.slane %v2064, %v2077
        %v2079 = vcombine.high %v2071, %v2071
        %v2080 = vcombine.high %v2078, %v2078
        %v2081 = vcombine.high %v1953, %v1953
        %v2083 = vunpack.c.l.s4 1983009808
        %v2084 = vunpack.c.0.s8 %v2083
        %v2085 = vlaneseq
        %v2086 = vshrl.u32 %v2085, 7
        %v2087 = vsub.s32 %v2084, %v2086
        %v2088 = vrot.slane %v1953, %v2087
        %v2090 = vunpack.c.l.s4 1983009808
        %v2091 = vunpack.c.0.s8 %v2090
        %v2092 = vlaneseq
        %v2093 = vshrl.u32 %v2092, 7
        %v2094 = vsub.s32 %v2091, %v2093
        %v2095 = vrot.slane %v2081, %v2094
        %v2096 = vcombine.high %v2088, %v2088
        %v2097 = vcombine.high %v2095, %v2095
        %v2098 = vcombine.high %v1954, %v1954
        %v2100 = vunpack.c.l.s4 1983009808
        %v2101 = vunpack.c.0.s8 %v2100
        %v2102 = vlaneseq
        %v2103 = vshrl.u32 %v2102, 7
        %v2104 = vsub.s32 %v2101, %v2103
        %v2105 = vrot.slane %v1954, %v2104
        %v2107 = vunpack.c.l.s4 1983009808
        %v2108 = vunpack.c.0.s8 %v2107
        %v2109 = vlaneseq
        %v2110 = vshrl.u32 %v2109, 7
        %v2111 = vsub.s32 %v2108, %v2110
        %v2112 = vrot.slane %v2098, %v2111
        %v2113 = vcombine.high %v2105, %v2105
        %v2114 = vcombine.high %v2112, %v2112
        %v2115 = vcombine.high %v1955, %v1955
        %v2117 = vunpack.c.l.s4 1983009808
        %v2118 = vunpack.c.0.s8 %v2117
        %v2119 = vlaneseq
        %v2120 = vshrl.u32 %v2119, 7
        %v2121 = vsub.s32 %v2118, %v2120
        %v2122 = vrot.slane %v1955, %v2121
        %v2124 = vunpack.c.l.s4 1983009808
        %v2125 = vunpack.c.0.s8 %v2124
        %v2126 = vlaneseq
        %v2127 = vshrl.u32 %v2126, 7
        %v2128 = vsub.s32 %v2125, %v2127
        %v2129 = vrot.slane %v2115, %v2128
        %v2130 = vcombine.high %v2122, %v2122
        %v2131 = vcombine.high %v2129, %v2129
        %v2132 = vcombine.high %v1956, %v1956
        %v2134 = vunpack.c.l.s4 1983009808
        %v2135 = vunpack.c.0.s8 %v2134
        %v2136 = vlaneseq
        %v2137 = vshrl.u32 %v2136, 7
        %v2138 = vsub.s32 %v2135, %v2137
        %v2139 = vrot.slane %v1956, %v2138
        %v2141 = vunpack.c.l.s4 1983009808
        %v2142 = vunpack.c.0.s8 %v2141
        %v2143 = vlaneseq
        %v2144 = vshrl.u32 %v2143, 7
        %v2145 = vsub.s32 %v2142, %v2144
        %v2146 = vrot.slane %v2132, %v2145
        %v2147 = vcombine.high %v2139, %v2139
        %v2148 = vcombine.high %v2146, %v2146
        %v2149 = vcombine.high %v1957, %v1957
        %v2151 = vunpack.c.l.s4 1983009808
        %v2152 = vunpack.c.0.s8 %v2151
        %v2153 = vlaneseq
        %v2154 = vshrl.u32 %v2153, 7
        %v2155 = vsub.s32 %v2152, %v2154
        %v2156 = vrot.slane %v1957, %v2155
        %v2158 = vunpack.c.l.s4 1983009808
        %v2159 = vunpack.c.0.s8 %v2158
        %v2160 = vlaneseq
        %v2161 = vshrl.u32 %v2160, 7
        %v2162 = vsub.s32 %v2159, %v2161
        %v2163 = vrot.slane %v2149, %v2162
        %v2164 = vcombine.high %v2156, %v2156
        %v2165 = vcombine.high %v2163, %v2163
        %v2166 = vcombine.high %v1958, %v1958
        %v2168 = vunpack.c.l.s4 1983009808
        %v2169 = vunpack.c.0.s8 %v2168
        %v2170 = vlaneseq
        %v2171 = vshrl.u32 %v2170, 7
        %v2172 = vsub.s32 %v2169, %v2171
        %v2173 = vrot.slane %v1958, %v2172
        %v2175 = vunpack.c.l.s4 1983009808
        %v2176 = vunpack.c.0.s8 %v2175
        %v2177 = vlaneseq
        %v2178 = vshrl.u32 %v2177, 7
        %v2179 = vsub.s32 %v2176, %v2178
        %v2180 = vrot.slane %v2166, %v2179
        %v2181 = vcombine.high %v2173, %v2173
        %v2182 = vcombine.high %v2180, %v2180
        %v2183 = vcombine.high %v1959, %v1959
        %v2185 = vunpack.c.l.s4 1983009808
        %v2186 = vunpack.c.0.s8 %v2185
        %v2187 = vlaneseq
        %v2188 = vshrl.u32 %v2187, 7
        %v2189 = vsub.s32 %v2186, %v2188
        %v2190 = vrot.slane %v1959, %v2189
        %v2192 = vunpack.c.l.s4 1983009808
        %v2193 = vunpack.c.0.s8 %v2192
        %v2194 = vlaneseq
        %v2195 = vshrl.u32 %v2194, 7
        %v2196 = vsub.s32 %v2193, %v2195
        %v2197 = vrot.slane %v2183, %v2196
        %v2198 = vcombine.high %v2190, %v2190
        %v2199 = vcombine.high %v2197, %v2197
        %v2200 = vcombine.high %v1960, %v1960
        %v2202 = vunpack.c.l.s4 1983009808
        %v2203 = vunpack.c.0.s8 %v2202
        %v2204 = vlaneseq
        %v2205 = vshrl.u32 %v2204, 7
        %v2206 = vsub.s32 %v2203, %v2205
        %v2207 = vrot.slane %v1960, %v2206
        %v2209 = vunpack.c.l.s4 1983009808
        %v2210 = vunpack.c.0.s8 %v2209
        %v2211 = vlaneseq
        %v2212 = vshrl.u32 %v2211, 7
        %v2213 = vsub.s32 %v2210, %v2212
        %v2214 = vrot.slane %v2200, %v2213
        %v2215 = vcombine.high %v2207, %v2207
        %v2216 = vcombine.high %v2214, %v2214
        %v2217 = vcombine.high %v1961, %v1961
        %v2219 = vunpack.c.l.s4 1983009808
        %v2220 = vunpack.c.0.s8 %v2219
        %v2221 = vlaneseq
        %v2222 = vshrl.u32 %v2221, 7
        %v2223 = vsub.s32 %v2220, %v2222
        %v2224 = vrot.slane %v1961, %v2223
        %v2226 = vunpack.c.l.s4 1983009808
        %v2227 = vunpack.c.0.s8 %v2226
        %v2228 = vlaneseq
        %v2229 = vshrl.u32 %v2228, 7
        %v2230 = vsub.s32 %v2227, %v2229
        %v2231 = vrot.slane %v2217, %v2230
        %v2232 = vcombine.high %v2224, %v2224
        %v2233 = vcombine.high %v2231, %v2231
        %v2234 = vcombine.high %v1962, %v1962
        %v2236 = vunpack.c.l.s4 1983009808
        %v2237 = vunpack.c.0.s8 %v2236
        %v2238 = vlaneseq
        %v2239 = vshrl.u32 %v2238, 7
        %v2240 = vsub.s32 %v2237, %v2239
        %v2241 = vrot.slane %v1962, %v2240
        %v2243 = vunpack.c.l.s4 1983009808
        %v2244 = vunpack.c.0.s8 %v2243
        %v2245 = vlaneseq
        %v2246 = vshrl.u32 %v2245, 7
        %v2247 = vsub.s32 %v2244, %v2246
        %v2248 = vrot.slane %v2234, %v2247
        %v2249 = vcombine.high %v2241, %v2241
        %v2250 = vcombine.high %v2248, %v2248
        %v2251 = vcombine.high %v1963, %v1963
        %v2253 = vunpack.c.l.s4 1983009808
        %v2254 = vunpack.c.0.s8 %v2253
        %v2255 = vlaneseq
        %v2256 = vshrl.u32 %v2255, 7
        %v2257 = vsub.s32 %v2254, %v2256
        %v2258 = vrot.slane %v1963, %v2257
        %v2260 = vunpack.c.l.s4 1983009808
        %v2261 = vunpack.c.0.s8 %v2260
        %v2262 = vlaneseq
        %v2263 = vshrl.u32 %v2262, 7
        %v2264 = vsub.s32 %v2261, %v2263
        %v2265 = vrot.slane %v2251, %v2264
        %v2266 = vcombine.high %v2258, %v2258
        %v2267 = vcombine.high %v2265, %v2265
        %v2268 = vcombine.high %v1964, %v1964
        %v2270 = vunpack.c.l.s4 1983009808
        %v2271 = vunpack.c.0.s8 %v2270
        %v2272 = vlaneseq
        %v2273 = vshrl.u32 %v2272, 7
        %v2274 = vsub.s32 %v2271, %v2273
        %v2275 = vrot.slane %v1964, %v2274
        %v2277 = vunpack.c.l.s4 1983009808
        %v2278 = vunpack.c.0.s8 %v2277
        %v2279 = vlaneseq
        %v2280 = vshrl.u32 %v2279, 7
        %v2281 = vsub.s32 %v2278, %v2280
        %v2282 = vrot.slane %v2268, %v2281
        %v2283 = vcombine.high %v2275, %v2275
        %v2284 = vcombine.high %v2282, %v2282
        %v2285 = vcombine.high %v1965, %v1965
        %v2287 = vunpack.c.l.s4 1983009808
        %v2288 = vunpack.c.0.s8 %v2287
        %v2289 = vlaneseq
        %v2290 = vshrl.u32 %v2289, 7
        %v2291 = vsub.s32 %v2288, %v2290
        %v2292 = vrot.slane %v1965, %v2291
        %v2294 = vunpack.c.l.s4 1983009808
        %v2295 = vunpack.c.0.s8 %v2294
        %v2296 = vlaneseq
        %v2297 = vshrl.u32 %v2296, 7
        %v2298 = vsub.s32 %v2295, %v2297
        %v2299 = vrot.slane %v2285, %v2298
        %v2300 = vcombine.high %v2292, %v2292
        %v2301 = vcombine.high %v2299, %v2299
        %v2302 = vcombine.high %v1966, %v1966
        %v2304 = vunpack.c.l.s4 1983009808
        %v2305 = vunpack.c.0.s8 %v2304
        %v2306 = vlaneseq
        %v2307 = vshrl.u32 %v2306, 7
        %v2308 = vsub.s32 %v2305, %v2307
        %v2309 = vrot.slane %v1966, %v2308
        %v2311 = vunpack.c.l.s4 1983009808
        %v2312 = vunpack.c.0.s8 %v2311
        %v2313 = vlaneseq
        %v2314 = vshrl.u32 %v2313, 7
        %v2315 = vsub.s32 %v2312, %v2314
        %v2316 = vrot.slane %v2302, %v2315
        %v2317 = vcombine.high %v2309, %v2309
        %v2318 = vcombine.high %v2316, %v2316
        %v2319 = vcombine.high %v1967, %v1967
        %v2321 = vunpack.c.l.s4 1983009808
        %v2322 = vunpack.c.0.s8 %v2321
        %v2323 = vlaneseq
        %v2324 = vshrl.u32 %v2323, 7
        %v2325 = vsub.s32 %v2322, %v2324
        %v2326 = vrot.slane %v1967, %v2325
        %v2328 = vunpack.c.l.s4 1983009808
        %v2329 = vunpack.c.0.s8 %v2328
        %v2330 = vlaneseq
        %v2331 = vshrl.u32 %v2330, 7
        %v2332 = vsub.s32 %v2329, %v2331
        %v2333 = vrot.slane %v2319, %v2332
        %v2334 = vcombine.high %v2326, %v2326
        %v2335 = vcombine.high %v2333, %v2333
        %v2336 = vcombine.high %v1968, %v1968
        %v2338 = vunpack.c.l.s4 1983009808
        %v2339 = vunpack.c.0.s8 %v2338
        %v2340 = vlaneseq
        %v2341 = vshrl.u32 %v2340, 7
        %v2342 = vsub.s32 %v2339, %v2341
        %v2343 = vrot.slane %v1968, %v2342
        %v2345 = vunpack.c.l.s4 1983009808
        %v2346 = vunpack.c.0.s8 %v2345
        %v2347 = vlaneseq
        %v2348 = vshrl.u32 %v2347, 7
        %v2349 = vsub.s32 %v2346, %v2348
        %v2350 = vrot.slane %v2336, %v2349
        %v2351 = vcombine.high %v2343, %v2343
        %v2352 = vcombine.high %v2350, %v2350
        %v2353 = vcombine.high %v1969, %v1969
        %v2355 = vunpack.c.l.s4 1983009808
        %v2356 = vunpack.c.0.s8 %v2355
        %v2357 = vlaneseq
        %v2358 = vshrl.u32 %v2357, 7
        %v2359 = vsub.s32 %v2356, %v2358
        %v2360 = vrot.slane %v1969, %v2359
        %v2362 = vunpack.c.l.s4 1983009808
        %v2363 = vunpack.c.0.s8 %v2362
        %v2364 = vlaneseq
        %v2365 = vshrl.u32 %v2364, 7
        %v2366 = vsub.s32 %v2363, %v2365
        %v2367 = vrot.slane %v2353, %v2366
        %v2368 = vcombine.high %v2360, %v2360
        %v2369 = vcombine.high %v2367, %v2367
        %v2370 = vcombine.high %v1970, %v1970
        %v2372 = vunpack.c.l.s4 1983009808
        %v2373 = vunpack.c.0.s8 %v2372
        %v2374 = vlaneseq
        %v2375 = vshrl.u32 %v2374, 7
        %v2376 = vsub.s32 %v2373, %v2375
        %v2377 = vrot.slane %v1970, %v2376
        %v2379 = vunpack.c.l.s4 1983009808
        %v2380 = vunpack.c.0.s8 %v2379
        %v2381 = vlaneseq
        %v2382 = vshrl.u32 %v2381, 7
        %v2383 = vsub.s32 %v2380, %v2382
        %v2384 = vrot.slane %v2370, %v2383
        %v2385 = vcombine.high %v2377, %v2377
        %v2386 = vcombine.high %v2384, %v2384
        %v2387 = vcombine.high %v1971, %v1971
        %v2389 = vunpack.c.l.s4 1983009808
        %v2390 = vunpack.c.0.s8 %v2389
        %v2391 = vlaneseq
        %v2392 = vshrl.u32 %v2391, 7
        %v2393 = vsub.s32 %v2390, %v2392
        %v2394 = vrot.slane %v1971, %v2393
        %v2396 = vunpack.c.l.s4 1983009808
        %v2397 = vunpack.c.0.s8 %v2396
        %v2398 = vlaneseq
        %v2399 = vshrl.u32 %v2398, 7
        %v2400 = vsub.s32 %v2397, %v2399
        %v2401 = vrot.slane %v2387, %v2400
        %v2402 = vcombine.high %v2394, %v2394
        %v2403 = vcombine.high %v2401, %v2401
        %v2404 = vcombine.high %v1972, %v1972
        %v2406 = vunpack.c.l.s4 1983009808
        %v2407 = vunpack.c.0.s8 %v2406
        %v2408 = vlaneseq
        %v2409 = vshrl.u32 %v2408, 7
        %v2410 = vsub.s32 %v2407, %v2409
        %v2411 = vrot.slane %v1972, %v2410
        %v2413 = vunpack.c.l.s4 1983009808
        %v2414 = vunpack.c.0.s8 %v2413
        %v2415 = vlaneseq
        %v2416 = vshrl.u32 %v2415, 7
        %v2417 = vsub.s32 %v2414, %v2416
        %v2418 = vrot.slane %v2404, %v2417
        %v2419 = vcombine.high %v2411, %v2411
        %v2420 = vcombine.high %v2418, %v2418
        %v2421 = vcombine.high %v1973, %v1973
        %v2423 = vunpack.c.l.s4 1983009808
        %v2424 = vunpack.c.0.s8 %v2423
        %v2425 = vlaneseq
        %v2426 = vshrl.u32 %v2425, 7
        %v2427 = vsub.s32 %v2424, %v2426
        %v2428 = vrot.slane %v1973, %v2427
        %v2430 = vunpack.c.l.s4 1983009808
        %v2431 = vunpack.c.0.s8 %v2430
        %v2432 = vlaneseq
        %v2433 = vshrl.u32 %v2432, 7
        %v2434 = vsub.s32 %v2431, %v2433
        %v2435 = vrot.slane %v2421, %v2434
        %v2436 = vcombine.high %v2428, %v2428
        %v2437 = vcombine.high %v2435, %v2435
        %v2438 = vcombine.high %v1974, %v1974
        %v2440 = vunpack.c.l.s4 1983009808
        %v2441 = vunpack.c.0.s8 %v2440
        %v2442 = vlaneseq
        %v2443 = vshrl.u32 %v2442, 7
        %v2444 = vsub.s32 %v2441, %v2443
        %v2445 = vrot.slane %v1974, %v2444
        %v2447 = vunpack.c.l.s4 1983009808
        %v2448 = vunpack.c.0.s8 %v2447
        %v2449 = vlaneseq
        %v2450 = vshrl.u32 %v2449, 7
        %v2451 = vsub.s32 %v2448, %v2450
        %v2452 = vrot.slane %v2438, %v2451
        %v2453 = vcombine.high %v2445, %v2445
        %v2454 = vcombine.high %v2452, %v2452
        %v2455 = vcombine.high %v1975, %v1975
        %v2457 = vunpack.c.l.s4 1983009808
        %v2458 = vunpack.c.0.s8 %v2457
        %v2459 = vlaneseq
        %v2460 = vshrl.u32 %v2459, 7
        %v2461 = vsub.s32 %v2458, %v2460
        %v2462 = vrot.slane %v1975, %v2461
        %v2464 = vunpack.c.l.s4 1983009808
        %v2465 = vunpack.c.0.s8 %v2464
        %v2466 = vlaneseq
        %v2467 = vshrl.u32 %v2466, 7
        %v2468 = vsub.s32 %v2465, %v2467
        %v2469 = vrot.slane %v2455, %v2468
        %v2470 = vcombine.high %v2462, %v2462
        %v2471 = vcombine.high %v2469, %v2469
        %v2472 = vcombine.high %v1976, %v1976
        %v2474 = vunpack.c.l.s4 1983009808
        %v2475 = vunpack.c.0.s8 %v2474
        %v2476 = vlaneseq
        %v2477 = vshrl.u32 %v2476, 7
        %v2478 = vsub.s32 %v2475, %v2477
        %v2479 = vrot.slane %v1976, %v2478
        %v2481 = vunpack.c.l.s4 1983009808
        %v2482 = vunpack.c.0.s8 %v2481
        %v2483 = vlaneseq
        %v2484 = vshrl.u32 %v2483, 7
        %v2485 = vsub.s32 %v2482, %v2484
        %v2486 = vrot.slane %v2472, %v2485
        %v2487 = vcombine.high %v2479, %v2479
        %v2488 = vcombine.high %v2486, %v2486
        %v2489 = vcombine.high %v1977, %v1977
        %v2491 = vunpack.c.l.s4 1983009808
        %v2492 = vunpack.c.0.s8 %v2491
        %v2493 = vlaneseq
        %v2494 = vshrl.u32 %v2493, 7
        %v2495 = vsub.s32 %v2492, %v2494
        %v2496 = vrot.slane %v1977, %v2495
        %v2498 = vunpack.c.l.s4 1983009808
        %v2499 = vunpack.c.0.s8 %v2498
        %v2500 = vlaneseq
        %v2501 = vshrl.u32 %v2500, 7
        %v2502 = vsub.s32 %v2499, %v2501
        %v2503 = vrot.slane %v2489, %v2502
        %v2504 = vcombine.high %v2496, %v2496
        %v2505 = vcombine.high %v2503, %v2503
        %v2506 = vcombine.high %v1978, %v1978
        %v2508 = vunpack.c.l.s4 1983009808
        %v2509 = vunpack.c.0.s8 %v2508
        %v2510 = vlaneseq
        %v2511 = vshrl.u32 %v2510, 7
        %v2512 = vsub.s32 %v2509, %v2511
        %v2513 = vrot.slane %v1978, %v2512
        %v2515 = vunpack.c.l.s4 1983009808
        %v2516 = vunpack.c.0.s8 %v2515
        %v2517 = vlaneseq
        %v2518 = vshrl.u32 %v2517, 7
        %v2519 = vsub.s32 %v2516, %v2518
        %v2520 = vrot.slane %v2506, %v2519
        %v2521 = vcombine.high %v2513, %v2513
        %v2522 = vcombine.high %v2520, %v2520
        %v2523 = vcombine.high %v1979, %v1979
        %v2525 = vunpack.c.l.s4 1983009808
        %v2526 = vunpack.c.0.s8 %v2525
        %v2527 = vlaneseq
        %v2528 = vshrl.u32 %v2527, 7
        %v2529 = vsub.s32 %v2526, %v2528
        %v2530 = vrot.slane %v1979, %v2529
        %v2532 = vunpack.c.l.s4 1983009808
        %v2533 = vunpack.c.0.s8 %v2532
        %v2534 = vlaneseq
        %v2535 = vshrl.u32 %v2534, 7
        %v2536 = vsub.s32 %v2533, %v2535
        %v2537 = vrot.slane %v2523, %v2536
        %v2538 = vcombine.high %v2530, %v2530
        %v2539 = vcombine.high %v2537, %v2537
        %v2540 = vcombine.high %v1980, %v1980
        %v2542 = vunpack.c.l.s4 1983009808
        %v2543 = vunpack.c.0.s8 %v2542
        %v2544 = vlaneseq
        %v2545 = vshrl.u32 %v2544, 7
        %v2546 = vsub.s32 %v2543, %v2545
        %v2547 = vrot.slane %v1980, %v2546
        %v2549 = vunpack.c.l.s4 1983009808
        %v2550 = vunpack.c.0.s8 %v2549
        %v2551 = vlaneseq
        %v2552 = vshrl.u32 %v2551, 7
        %v2553 = vsub.s32 %v2550, %v2552
        %v2554 = vrot.slane %v2540, %v2553
        %v2555 = vcombine.high %v2547, %v2547
        %v2556 = vcombine.high %v2554, %v2554
        %v2685 = vrot.slane %v2020, 7
        %v2686 = vrot.slane %v2685, 2
        %v2687 = vrot.slane %v2028, 7
        %v2688 = vrot.slane %v2687, 2
        %v2689 = vrot.slane %v2027, 7
        %v2690 = vrot.slane %v2689, 2
        %v2691 = vrot.slane %v2029, 7
        %v2692 = vrot.slane %v2691, 2
        %v2693 = vrot.slane %v2037, 7
        %v2694 = vrot.slane %v2693, 2
        %v2695 = vrot.slane %v2045, 7
        %v2696 = vrot.slane %v2695, 2
        %v2697 = vrot.slane %v2044, 7
        %v2698 = vrot.slane %v2697, 2
        %v2699 = vrot.slane %v2046, 7
        %v2700 = vrot.slane %v2699, 2
        %v2701 = vrot.slane %v2054, 7
        %v2702 = vrot.slane %v2701, 2
        %v2703 = vrot.slane %v2062, 7
        %v2704 = vrot.slane %v2703, 2
        %v2705 = vrot.slane %v2061, 7
        %v2706 = vrot.slane %v2705, 2
        %v2707 = vrot.slane %v2063, 7
        %v2708 = vrot.slane %v2707, 2
        %v2709 = vrot.slane %v2071, 7
        %v2710 = vrot.slane %v2709, 2
        %v2711 = vrot.slane %v2079, 7
        %v2712 = vrot.slane %v2711, 2
        %v2713 = vrot.slane %v2078, 7
        %v2714 = vrot.slane %v2713, 2
        %v2715 = vrot.slane %v2080, 7
        %v2716 = vrot.slane %v2715, 2
        %v2717 = vrot.slane %v2088, 7
        %v2718 = vrot.slane %v2717, 2
        %v2719 = vrot.slane %v2096, 7
        %v2720 = vrot.slane %v2719, 2
        %v2721 = vrot.slane %v2095, 7
        %v2722 = vrot.slane %v2721, 2
        %v2723 = vrot.slane %v2097, 7
        %v2724 = vrot.slane %v2723, 2
        %v2725 = vrot.slane %v2105, 7
        %v2726 = vrot.slane %v2725, 2
        %v2727 = vrot.slane %v2113, 7
        %v2728 = vrot.slane %v2727, 2
        %v2729 = vrot.slane %v2112, 7
        %v2730 = vrot.slane %v2729, 2
        %v2731 = vrot.slane %v2114, 7
        %v2732 = vrot.slane %v2731, 2
        %v2733 = vrot.slane %v2122, 7
        %v2734 = vrot.slane %v2733, 2
        %v2735 = vrot.slane %v2130, 7
        %v2736 = vrot.slane %v2735, 2
        %v2737 = vrot.slane %v2129, 7
        %v2738 = vrot.slane %v2737, 2
        %v2739 = vrot.slane %v2131, 7
        %v2740 = vrot.slane %v2739, 2
        %v2741 = vrot.slane %v2139, 7
        %v2742 = vrot.slane %v2741, 2
        %v2743 = vrot.slane %v2147, 7
        %v2744 = vrot.slane %v2743, 2
        %v2745 = vrot.slane %v2146, 7
        %v2746 = vrot.slane %v2745, 2
        %v2747 = vrot.slane %v2148, 7
        %v2748 = vrot.slane %v2747, 2
        %v2749 = vrot.slane %v2156, 7
        %v2750 = vrot.slane %v2749, 2
        %v2751 = vrot.slane %v2164, 7
        %v2752 = vrot.slane %v2751, 2
        %v2753 = vrot.slane %v2163, 7
        %v2754 = vrot.slane %v2753, 2
        %v2755 = vrot.slane %v2165, 7
        %v2756 = vrot.slane %v2755, 2
        %v2757 = vrot.slane %v2173, 7
        %v2758 = vrot.slane %v2757, 2
        %v2759 = vrot.slane %v2181, 7
        %v2760 = vrot.slane %v2759, 2
        %v2761 = vrot.slane %v2180, 7
        %v2762 = vrot.slane %v2761, 2
        %v2763 = vrot.slane %v2182, 7
        %v2764 = vrot.slane %v2763, 2
        %v2765 = vrot.slane %v2190, 7
        %v2766 = vrot.slane %v2765, 2
        %v2767 = vrot.slane %v2198, 7
        %v2768 = vrot.slane %v2767, 2
        %v2769 = vrot.slane %v2197, 7
        %v2770 = vrot.slane %v2769, 2
        %v2771 = vrot.slane %v2199, 7
        %v2772 = vrot.slane %v2771, 2
        %v2773 = vrot.slane %v2207, 7
        %v2774 = vrot.slane %v2773, 2
        %v2775 = vrot.slane %v2215, 7
        %v2776 = vrot.slane %v2775, 2
        %v2777 = vrot.slane %v2214, 7
        %v2778 = vrot.slane %v2777, 2
        %v2779 = vrot.slane %v2216, 7
        %v2780 = vrot.slane %v2779, 2
        %v2781 = vrot.slane %v2224, 7
        %v2782 = vrot.slane %v2781, 2
        %v2783 = vrot.slane %v2232, 7
        %v2784 = vrot.slane %v2783, 2
        %v2785 = vrot.slane %v2231, 7
        %v2786 = vrot.slane %v2785, 2
        %v2787 = vrot.slane %v2233, 7
        %v2788 = vrot.slane %v2787, 2
        %v2789 = vrot.slane %v2241, 7
        %v2790 = vrot.slane %v2789, 2
        %v2791 = vrot.slane %v2249, 7
        %v2792 = vrot.slane %v2791, 2
        %v2793 = vrot.slane %v2248, 7
        %v2794 = vrot.slane %v2793, 2
        %v2795 = vrot.slane %v2250, 7
        %v2796 = vrot.slane %v2795, 2
        %v2797 = vrot.slane %v2258, 7
        %v2798 = vrot.slane %v2797, 2
        %v2799 = vrot.slane %v2266, 7
        %v2800 = vrot.slane %v2799, 2
        %v2801 = vrot.slane %v2265, 7
        %v2802 = vrot.slane %v2801, 2
        %v2803 = vrot.slane %v2267, 7
        %v2804 = vrot.slane %v2803, 2
        %v2805 = vrot.slane %v2275, 7
        %v2806 = vrot.slane %v2805, 2
        %v2807 = vrot.slane %v2283, 7
        %v2808 = vrot.slane %v2807, 2
        %v2809 = vrot.slane %v2282, 7
        %v2810 = vrot.slane %v2809, 2
        %v2811 = vrot.slane %v2284, 7
        %v2812 = vrot.slane %v2811, 2
        %v2813 = vrot.slane %v2292, 7
        %v2814 = vrot.slane %v2813, 2
        %v2815 = vrot.slane %v2300, 7
        %v2816 = vrot.slane %v2815, 2
        %v2817 = vrot.slane %v2299, 7
        %v2818 = vrot.slane %v2817, 2
        %v2819 = vrot.slane %v2301, 7
        %v2820 = vrot.slane %v2819, 2
        %v2821 = vrot.slane %v2309, 7
        %v2822 = vrot.slane %v2821, 2
        %v2823 = vrot.slane %v2317, 7
        %v2824 = vrot.slane %v2823, 2
        %v2825 = vrot.slane %v2316, 7
        %v2826 = vrot.slane %v2825, 2
        %v2827 = vrot.slane %v2318, 7
        %v2828 = vrot.slane %v2827, 2
        %v2829 = vrot.slane %v2326, 7
        %v2830 = vrot.slane %v2829, 2
        %v2831 = vrot.slane %v2334, 7
        %v2832 = vrot.slane %v2831, 2
        %v2833 = vrot.slane %v2333, 7
        %v2834 = vrot.slane %v2833, 2
        %v2835 = vrot.slane %v2335, 7
        %v2836 = vrot.slane %v2835, 2
        %v2837 = vrot.slane %v2343, 7
        %v2838 = vrot.slane %v2837, 2
        %v2839 = vrot.slane %v2351, 7
        %v2840 = vrot.slane %v2839, 2
        %v2841 = vrot.slane %v2350, 7
        %v2842 = vrot.slane %v2841, 2
        %v2843 = vrot.slane %v2352, 7
        %v2844 = vrot.slane %v2843, 2
        %v2845 = vrot.slane %v2360, 7
        %v2846 = vrot.slane %v2845, 2
        %v2847 = vrot.slane %v2368, 7
        %v2848 = vrot.slane %v2847, 2
        %v2849 = vrot.slane %v2367, 7
        %v2850 = vrot.slane %v2849, 2
        %v2851 = vrot.slane %v2369, 7
        %v2852 = vrot.slane %v2851, 2
        %v2853 = vrot.slane %v2377, 7
        %v2854 = vrot.slane %v2853, 2
        %v2855 = vrot.slane %v2385, 7
        %v2856 = vrot.slane %v2855, 2
        %v2857 = vrot.slane %v2384, 7
        %v2858 = vrot.slane %v2857, 2
        %v2859 = vrot.slane %v2386, 7
        %v2860 = vrot.slane %v2859, 2
        %v2861 = vrot.slane %v2394, 7
        %v2862 = vrot.slane %v2861, 2
        %v2863 = vrot.slane %v2402, 7
        %v2864 = vrot.slane %v2863, 2
        %v2865 = vrot.slane %v2401, 7
        %v2866 = vrot.slane %v2865, 2
        %v2867 = vrot.slane %v2403, 7
        %v2868 = vrot.slane %v2867, 2
        %v2869 = vrot.slane %v2411, 7
        %v2870 = vrot.slane %v2869, 2
        %v2871 = vrot.slane %v2419, 7
        %v2872 = vrot.slane %v2871, 2
        %v2873 = vrot.slane %v2418, 7
        %v2874 = vrot.slane %v2873, 2
        %v2875 = vrot.slane %v2420, 7
        %v2876 = vrot.slane %v2875, 2
        %v2877 = vrot.slane %v2428, 7
        %v2878 = vrot.slane %v2877, 2
        %v2879 = vrot.slane %v2436, 7
        %v2880 = vrot.slane %v2879, 2
        %v2881 = vrot.slane %v2435, 7
        %v2882 = vrot.slane %v2881, 2
        %v2883 = vrot.slane %v2437, 7
        %v2884 = vrot.slane %v2883, 2
        %v2885 = vrot.slane %v2445, 7
        %v2886 = vrot.slane %v2885, 2
        %v2887 = vrot.slane %v2453, 7
        %v2888 = vrot.slane %v2887, 2
        %v2889 = vrot.slane %v2452, 7
        %v2890 = vrot.slane %v2889, 2
        %v2891 = vrot.slane %v2454, 7
        %v2892 = vrot.slane %v2891, 2
        %v2893 = vrot.slane %v2462, 7
        %v2894 = vrot.slane %v2893, 2
        %v2895 = vrot.slane %v2470, 7
        %v2896 = vrot.slane %v2895, 2
        %v2897 = vrot.slane %v2469, 7
        %v2898 = vrot.slane %v2897, 2
        %v2899 = vrot.slane %v2471, 7
        %v2900 = vrot.slane %v2899, 2
        %v2901 = vrot.slane %v2479, 7
        %v2902 = vrot.slane %v2901, 2
        %v2903 = vrot.slane %v2487, 7
        %v2904 = vrot.slane %v2903, 2
        %v2905 = vrot.slane %v2486, 7
        %v2906 = vrot.slane %v2905, 2
        %v2907 = vrot.slane %v2488, 7
        %v2908 = vrot.slane %v2907, 2
        %v2909 = vrot.slane %v2496, 7
        %v2910 = vrot.slane %v2909, 2
        %v2911 = vrot.slane %v2504, 7
        %v2912 = vrot.slane %v2911, 2
        %v2913 = vrot.slane %v2503, 7
        %v2914 = vrot.slane %v2913, 2
        %v2915 = vrot.slane %v2505, 7
        %v2916 = vrot.slane %v2915, 2
        %v2917 = vrot.slane %v2513, 7
        %v2918 = vrot.slane %v2917, 2
        %v2919 = vrot.slane %v2521, 7
        %v2920 = vrot.slane %v2919, 2
        %v2921 = vrot.slane %v2520, 7
        %v2922 = vrot.slane %v2921, 2
        %v2923 = vrot.slane %v2522, 7
        %v2924 = vrot.slane %v2923, 2
        %v2925 = vrot.slane %v2530, 7
        %v2926 = vrot.slane %v2925, 2
        %v2927 = vrot.slane %v2538, 7
        %v2928 = vrot.slane %v2927, 2
        %v2929 = vrot.slane %v2537, 7
        %v2930 = vrot.slane %v2929, 2
        %v2931 = vrot.slane %v2539, 7
        %v2932 = vrot.slane %v2931, 2
        %v2933 = vrot.slane %v2547, 7
        %v2934 = vrot.slane %v2933, 2
        %v2935 = vrot.slane %v2555, 7
        %v2936 = vrot.slane %v2935, 2
        %v2937 = vrot.slane %v2554, 7
        %v2938 = vrot.slane %v2937, 2
        %v2939 = vrot.slane %v2556, 7
        %v2940 = vrot.slane %v2939, 2
        %v3069 = vmax.f32 %v2020, %v2686
        %v3070 = vmax.f32 %v2028, %v2688
        %v3071 = vmax.f32 %v2027, %v2690
        %v3072 = vmax.f32 %v2029, %v2692
        %v3073 = vmax.f32 %v2037, %v2694
        %v3074 = vmax.f32 %v2045, %v2696
        %v3075 = vmax.f32 %v2044, %v2698
        %v3076 = vmax.f32 %v2046, %v2700
        %v3077 = vmax.f32 %v2054, %v2702
        %v3078 = vmax.f32 %v2062, %v2704
        %v3079 = vmax.f32 %v2061, %v2706
        %v3080 = vmax.f32 %v2063, %v2708
        %v3081 = vmax.f32 %v2071, %v2710
        %v3082 = vmax.f32 %v2079, %v2712
        %v3083 = vmax.f32 %v2078, %v2714
        %v3084 = vmax.f32 %v2080, %v2716
        %v3085 = vmax.f32 %v2088, %v2718
        %v3086 = vmax.f32 %v2096, %v2720
        %v3087 = vmax.f32 %v2095, %v2722
        %v3088 = vmax.f32 %v2097, %v2724
        %v3089 = vmax.f32 %v2105, %v2726
        %v3090 = vmax.f32 %v2113, %v2728
        %v3091 = vmax.f32 %v2112, %v2730
        %v3092 = vmax.f32 %v2114, %v2732
        %v3093 = vmax.f32 %v2122, %v2734
        %v3094 = vmax.f32 %v2130, %v2736
        %v3095 = vmax.f32 %v2129, %v2738
        %v3096 = vmax.f32 %v2131, %v2740
        %v3097 = vmax.f32 %v2139, %v2742
        %v3098 = vmax.f32 %v2147, %v2744
        %v3099 = vmax.f32 %v2146, %v2746
        %v3100 = vmax.f32 %v2148, %v2748
        %v3101 = vmax.f32 %v2156, %v2750
        %v3102 = vmax.f32 %v2164, %v2752
        %v3103 = vmax.f32 %v2163, %v2754
        %v3104 = vmax.f32 %v2165, %v2756
        %v3105 = vmax.f32 %v2173, %v2758
        %v3106 = vmax.f32 %v2181, %v2760
        %v3107 = vmax.f32 %v2180, %v2762
        %v3108 = vmax.f32 %v2182, %v2764
        %v3109 = vmax.f32 %v2190, %v2766
        %v3110 = vmax.f32 %v2198, %v2768
        %v3111 = vmax.f32 %v2197, %v2770
        %v3112 = vmax.f32 %v2199, %v2772
        %v3113 = vmax.f32 %v2207, %v2774
        %v3114 = vmax.f32 %v2215, %v2776
        %v3115 = vmax.f32 %v2214, %v2778
        %v3116 = vmax.f32 %v2216, %v2780
        %v3117 = vmax.f32 %v2224, %v2782
        %v3118 = vmax.f32 %v2232, %v2784
        %v3119 = vmax.f32 %v2231, %v2786
        %v3120 = vmax.f32 %v2233, %v2788
        %v3121 = vmax.f32 %v2241, %v2790
        %v3122 = vmax.f32 %v2249, %v2792
        %v3123 = vmax.f32 %v2248, %v2794
        %v3124 = vmax.f32 %v2250, %v2796
        %v3125 = vmax.f32 %v2258, %v2798
        %v3126 = vmax.f32 %v2266, %v2800
        %v3127 = vmax.f32 %v2265, %v2802
        %v3128 = vmax.f32 %v2267, %v2804
        %v3129 = vmax.f32 %v2275, %v2806
        %v3130 = vmax.f32 %v2283, %v2808
        %v3131 = vmax.f32 %v2282, %v2810
        %v3132 = vmax.f32 %v2284, %v2812
        %v3133 = vmax.f32 %v2292, %v2814
        %v3134 = vmax.f32 %v2300, %v2816
        %v3135 = vmax.f32 %v2299, %v2818
        %v3136 = vmax.f32 %v2301, %v2820
        %v3137 = vmax.f32 %v2309, %v2822
        %v3138 = vmax.f32 %v2317, %v2824
        %v3139 = vmax.f32 %v2316, %v2826
        %v3140 = vmax.f32 %v2318, %v2828
        %v3141 = vmax.f32 %v2326, %v2830
        %v3142 = vmax.f32 %v2334, %v2832
        %v3143 = vmax.f32 %v2333, %v2834
        %v3144 = vmax.f32 %v2335, %v2836
        %v3145 = vmax.f32 %v2343, %v2838
        %v3146 = vmax.f32 %v2351, %v2840
        %v3147 = vmax.f32 %v2350, %v2842
        %v3148 = vmax.f32 %v2352, %v2844
        %v3149 = vmax.f32 %v2360, %v2846
        %v3150 = vmax.f32 %v2368, %v2848
        %v3151 = vmax.f32 %v2367, %v2850
        %v3152 = vmax.f32 %v2369, %v2852
        %v3153 = vmax.f32 %v2377, %v2854
        %v3154 = vmax.f32 %v2385, %v2856
        %v3155 = vmax.f32 %v2384, %v2858
        %v3156 = vmax.f32 %v2386, %v2860
        %v3157 = vmax.f32 %v2394, %v2862
        %v3158 = vmax.f32 %v2402, %v2864
        %v3159 = vmax.f32 %v2401, %v2866
        %v3160 = vmax.f32 %v2403, %v2868
        %v3161 = vmax.f32 %v2411, %v2870
        %v3162 = vmax.f32 %v2419, %v2872
        %v3163 = vmax.f32 %v2418, %v2874
        %v3164 = vmax.f32 %v2420, %v2876
        %v3165 = vmax.f32 %v2428, %v2878
        %v3166 = vmax.f32 %v2436, %v2880
        %v3167 = vmax.f32 %v2435, %v2882
        %v3168 = vmax.f32 %v2437, %v2884
        %v3169 = vmax.f32 %v2445, %v2886
        %v3170 = vmax.f32 %v2453, %v2888
        %v3171 = vmax.f32 %v2452, %v2890
        %v3172 = vmax.f32 %v2454, %v2892
        %v3173 = vmax.f32 %v2462, %v2894
        %v3174 = vmax.f32 %v2470, %v2896
        %v3175 = vmax.f32 %v2469, %v2898
        %v3176 = vmax.f32 %v2471, %v2900
        %v3177 = vmax.f32 %v2479, %v2902
        %v3178 = vmax.f32 %v2487, %v2904
        %v3179 = vmax.f32 %v2486, %v2906
        %v3180 = vmax.f32 %v2488, %v2908
        %v3181 = vmax.f32 %v2496, %v2910
        %v3182 = vmax.f32 %v2504, %v2912
        %v3183 = vmax.f32 %v2503, %v2914
        %v3184 = vmax.f32 %v2505, %v2916
        %v3185 = vmax.f32 %v2513, %v2918
        %v3186 = vmax.f32 %v2521, %v2920
        %v3187 = vmax.f32 %v2520, %v2922
        %v3188 = vmax.f32 %v2522, %v2924
        %v3189 = vmax.f32 %v2530, %v2926
        %v3190 = vmax.f32 %v2538, %v2928
        %v3191 = vmax.f32 %v2537, %v2930
        %v3192 = vmax.f32 %v2539, %v2932
        %v3193 = vmax.f32 %v2547, %v2934
        %v3194 = vmax.f32 %v2555, %v2936
        %v3195 = vmax.f32 %v2554, %v2938
        %v3196 = vmax.f32 %v2556, %v2940
        %v3197 = vmax.f32 %v3069, %v3077
        %v3198 = vmax.f32 %v3070, %v3078
        %v3199 = vmax.f32 %v3071, %v3079
        %v3200 = vmax.f32 %v3072, %v3080
        %v3201 = vmax.f32 %v3073, %v3081
        %v3202 = vmax.f32 %v3074, %v3082
        %v3203 = vmax.f32 %v3075, %v3083
        %v3204 = vmax.f32 %v3076, %v3084
        %v3205 = vmax.f32 %v3085, %v3093
        %v3206 = vmax.f32 %v3086, %v3094
        %v3207 = vmax.f32 %v3087, %v3095
        %v3208 = vmax.f32 %v3088, %v3096
        %v3209 = vmax.f32 %v3089, %v3097
        %v3210 = vmax.f32 %v3090, %v3098
        %v3211 = vmax.f32 %v3091, %v3099
        %v3212 = vmax.f32 %v3092, %v3100
        %v3213 = vmax.f32 %v3101, %v3109
        %v3214 = vmax.f32 %v3102, %v3110
        %v3215 = vmax.f32 %v3103, %v3111
        %v3216 = vmax.f32 %v3104, %v3112
        %v3217 = vmax.f32 %v3105, %v3113
        %v3218 = vmax.f32 %v3106, %v3114
        %v3219 = vmax.f32 %v3107, %v3115
        %v3220 = vmax.f32 %v3108, %v3116
        %v3221 = vmax.f32 %v3117, %v3125
        %v3222 = vmax.f32 %v3118, %v3126
        %v3223 = vmax.f32 %v3119, %v3127
        %v3224 = vmax.f32 %v3120, %v3128
        %v3225 = vmax.f32 %v3121, %v3129
        %v3226 = vmax.f32 %v3122, %v3130
        %v3227 = vmax.f32 %v3123, %v3131
        %v3228 = vmax.f32 %v3124, %v3132
        %v3229 = vmax.f32 %v3133, %v3141
        %v3230 = vmax.f32 %v3134, %v3142
        %v3231 = vmax.f32 %v3135, %v3143
        %v3232 = vmax.f32 %v3136, %v3144
        %v3233 = vmax.f32 %v3137, %v3145
        %v3234 = vmax.f32 %v3138, %v3146
        %v3235 = vmax.f32 %v3139, %v3147
        %v3236 = vmax.f32 %v3140, %v3148
        %v3237 = vmax.f32 %v3149, %v3157
        %v3238 = vmax.f32 %v3150, %v3158
        %v3239 = vmax.f32 %v3151, %v3159
        %v3240 = vmax.f32 %v3152, %v3160
        %v3241 = vmax.f32 %v3153, %v3161
        %v3242 = vmax.f32 %v3154, %v3162
        %v3243 = vmax.f32 %v3155, %v3163
        %v3244 = vmax.f32 %v3156, %v3164
        %v3245 = vmax.f32 %v3165, %v3173
        %v3246 = vmax.f32 %v3166, %v3174
        %v3247 = vmax.f32 %v3167, %v3175
        %v3248 = vmax.f32 %v3168, %v3176
        %v3249 = vmax.f32 %v3169, %v3177
        %v3250 = vmax.f32 %v3170, %v3178
        %v3251 = vmax.f32 %v3171, %v3179
        %v3252 = vmax.f32 %v3172, %v3180
        %v3253 = vmax.f32 %v3181, %v3189
        %v3254 = vmax.f32 %v3182, %v3190
        %v3255 = vmax.f32 %v3183, %v3191
        %v3256 = vmax.f32 %v3184, %v3192
        %v3257 = vmax.f32 %v3185, %v3193
        %v3258 = vmax.f32 %v3186, %v3194
        %v3259 = vmax.f32 %v3187, %v3195
        %v3260 = vmax.f32 %v3188, %v3196
        %v3325 = vlaneseq
        %v3326 = vshrl.u32 %v3325, 7
        %v3327 = vsub.s32 0, %v3326
        %v3328 = vrot.slane %v3197, %v3327
        %v3329 = vlaneseq
        %v3330 = vshrl.u32 %v3329, 7
        %v3331 = vsub.s32 0, %v3330
        %v3332 = vrot.slane %v3198, %v3331
        %v3333 = vlaneseq
        %v3334 = vshrl.u32 %v3333, 7
        %v3335 = vsub.s32 0, %v3334
        %v3336 = vrot.slane %v3199, %v3335
        %v3337 = vlaneseq
        %v3338 = vshrl.u32 %v3337, 7
        %v3339 = vsub.s32 0, %v3338
        %v3340 = vrot.slane %v3200, %v3339
        %v3341 = vlaneseq
        %v3342 = vshrl.u32 %v3341, 7
        %v3343 = vsub.s32 0, %v3342
        %v3344 = vrot.slane %v3201, %v3343
        %v3345 = vlaneseq
        %v3346 = vshrl.u32 %v3345, 7
        %v3347 = vsub.s32 0, %v3346
        %v3348 = vrot.slane %v3202, %v3347
        %v3349 = vlaneseq
        %v3350 = vshrl.u32 %v3349, 7
        %v3351 = vsub.s32 0, %v3350
        %v3352 = vrot.slane %v3203, %v3351
        %v3353 = vlaneseq
        %v3354 = vshrl.u32 %v3353, 7
        %v3355 = vsub.s32 0, %v3354
        %v3356 = vrot.slane %v3204, %v3355
        %v3357 = vlaneseq
        %v3358 = vshrl.u32 %v3357, 7
        %v3359 = vsub.s32 0, %v3358
        %v3360 = vrot.slane %v3205, %v3359
        %v3361 = vlaneseq
        %v3362 = vshrl.u32 %v3361, 7
        %v3363 = vsub.s32 0, %v3362
        %v3364 = vrot.slane %v3206, %v3363
        %v3365 = vlaneseq
        %v3366 = vshrl.u32 %v3365, 7
        %v3367 = vsub.s32 0, %v3366
        %v3368 = vrot.slane %v3207, %v3367
        %v3369 = vlaneseq
        %v3370 = vshrl.u32 %v3369, 7
        %v3371 = vsub.s32 0, %v3370
        %v3372 = vrot.slane %v3208, %v3371
        %v3373 = vlaneseq
        %v3374 = vshrl.u32 %v3373, 7
        %v3375 = vsub.s32 0, %v3374
        %v3376 = vrot.slane %v3209, %v3375
        %v3377 = vlaneseq
        %v3378 = vshrl.u32 %v3377, 7
        %v3379 = vsub.s32 0, %v3378
        %v3380 = vrot.slane %v3210, %v3379
        %v3381 = vlaneseq
        %v3382 = vshrl.u32 %v3381, 7
        %v3383 = vsub.s32 0, %v3382
        %v3384 = vrot.slane %v3211, %v3383
        %v3385 = vlaneseq
        %v3386 = vshrl.u32 %v3385, 7
        %v3387 = vsub.s32 0, %v3386
        %v3388 = vrot.slane %v3212, %v3387
        %v3389 = vlaneseq
        %v3390 = vshrl.u32 %v3389, 7
        %v3391 = vsub.s32 0, %v3390
        %v3392 = vrot.slane %v3213, %v3391
        %v3393 = vlaneseq
        %v3394 = vshrl.u32 %v3393, 7
        %v3395 = vsub.s32 0, %v3394
        %v3396 = vrot.slane %v3214, %v3395
        %v3397 = vlaneseq
        %v3398 = vshrl.u32 %v3397, 7
        %v3399 = vsub.s32 0, %v3398
        %v3400 = vrot.slane %v3215, %v3399
        %v3401 = vlaneseq
        %v3402 = vshrl.u32 %v3401, 7
        %v3403 = vsub.s32 0, %v3402
        %v3404 = vrot.slane %v3216, %v3403
        %v3405 = vlaneseq
        %v3406 = vshrl.u32 %v3405, 7
        %v3407 = vsub.s32 0, %v3406
        %v3408 = vrot.slane %v3217, %v3407
        %v3409 = vlaneseq
        %v3410 = vshrl.u32 %v3409, 7
        %v3411 = vsub.s32 0, %v3410
        %v3412 = vrot.slane %v3218, %v3411
        %v3413 = vlaneseq
        %v3414 = vshrl.u32 %v3413, 7
        %v3415 = vsub.s32 0, %v3414
        %v3416 = vrot.slane %v3219, %v3415
        %v3417 = vlaneseq
        %v3418 = vshrl.u32 %v3417, 7
        %v3419 = vsub.s32 0, %v3418
        %v3420 = vrot.slane %v3220, %v3419
        %v3421 = vlaneseq
        %v3422 = vshrl.u32 %v3421, 7
        %v3423 = vsub.s32 0, %v3422
        %v3424 = vrot.slane %v3221, %v3423
        %v3425 = vlaneseq
        %v3426 = vshrl.u32 %v3425, 7
        %v3427 = vsub.s32 0, %v3426
        %v3428 = vrot.slane %v3222, %v3427
        %v3429 = vlaneseq
        %v3430 = vshrl.u32 %v3429, 7
        %v3431 = vsub.s32 0, %v3430
        %v3432 = vrot.slane %v3223, %v3431
        %v3433 = vlaneseq
        %v3434 = vshrl.u32 %v3433, 7
        %v3435 = vsub.s32 0, %v3434
        %v3436 = vrot.slane %v3224, %v3435
        %v3437 = vlaneseq
        %v3438 = vshrl.u32 %v3437, 7
        %v3439 = vsub.s32 0, %v3438
        %v3440 = vrot.slane %v3225, %v3439
        %v3441 = vlaneseq
        %v3442 = vshrl.u32 %v3441, 7
        %v3443 = vsub.s32 0, %v3442
        %v3444 = vrot.slane %v3226, %v3443
        %v3445 = vlaneseq
        %v3446 = vshrl.u32 %v3445, 7
        %v3447 = vsub.s32 0, %v3446
        %v3448 = vrot.slane %v3227, %v3447
        %v3449 = vlaneseq
        %v3450 = vshrl.u32 %v3449, 7
        %v3451 = vsub.s32 0, %v3450
        %v3452 = vrot.slane %v3228, %v3451
        %v3453 = vlaneseq
        %v3454 = vshrl.u32 %v3453, 7
        %v3455 = vsub.s32 0, %v3454
        %v3456 = vrot.slane %v3229, %v3455
        %v3457 = vlaneseq
        %v3458 = vshrl.u32 %v3457, 7
        %v3459 = vsub.s32 0, %v3458
        %v3460 = vrot.slane %v3230, %v3459
        %v3461 = vlaneseq
        %v3462 = vshrl.u32 %v3461, 7
        %v3463 = vsub.s32 0, %v3462
        %v3464 = vrot.slane %v3231, %v3463
        %v3465 = vlaneseq
        %v3466 = vshrl.u32 %v3465, 7
        %v3467 = vsub.s32 0, %v3466
        %v3468 = vrot.slane %v3232, %v3467
        %v3469 = vlaneseq
        %v3470 = vshrl.u32 %v3469, 7
        %v3471 = vsub.s32 0, %v3470
        %v3472 = vrot.slane %v3233, %v3471
        %v3473 = vlaneseq
        %v3474 = vshrl.u32 %v3473, 7
        %v3475 = vsub.s32 0, %v3474
        %v3476 = vrot.slane %v3234, %v3475
        %v3477 = vlaneseq
        %v3478 = vshrl.u32 %v3477, 7
        %v3479 = vsub.s32 0, %v3478
        %v3480 = vrot.slane %v3235, %v3479
        %v3481 = vlaneseq
        %v3482 = vshrl.u32 %v3481, 7
        %v3483 = vsub.s32 0, %v3482
        %v3484 = vrot.slane %v3236, %v3483
        %v3485 = vlaneseq
        %v3486 = vshrl.u32 %v3485, 7
        %v3487 = vsub.s32 0, %v3486
        %v3488 = vrot.slane %v3237, %v3487
        %v3489 = vlaneseq
        %v3490 = vshrl.u32 %v3489, 7
        %v3491 = vsub.s32 0, %v3490
        %v3492 = vrot.slane %v3238, %v3491
        %v3493 = vlaneseq
        %v3494 = vshrl.u32 %v3493, 7
        %v3495 = vsub.s32 0, %v3494
        %v3496 = vrot.slane %v3239, %v3495
        %v3497 = vlaneseq
        %v3498 = vshrl.u32 %v3497, 7
        %v3499 = vsub.s32 0, %v3498
        %v3500 = vrot.slane %v3240, %v3499
        %v3501 = vlaneseq
        %v3502 = vshrl.u32 %v3501, 7
        %v3503 = vsub.s32 0, %v3502
        %v3504 = vrot.slane %v3241, %v3503
        %v3505 = vlaneseq
        %v3506 = vshrl.u32 %v3505, 7
        %v3507 = vsub.s32 0, %v3506
        %v3508 = vrot.slane %v3242, %v3507
        %v3509 = vlaneseq
        %v3510 = vshrl.u32 %v3509, 7
        %v3511 = vsub.s32 0, %v3510
        %v3512 = vrot.slane %v3243, %v3511
        %v3513 = vlaneseq
        %v3514 = vshrl.u32 %v3513, 7
        %v3515 = vsub.s32 0, %v3514
        %v3516 = vrot.slane %v3244, %v3515
        %v3517 = vlaneseq
        %v3518 = vshrl.u32 %v3517, 7
        %v3519 = vsub.s32 0, %v3518
        %v3520 = vrot.slane %v3245, %v3519
        %v3521 = vlaneseq
        %v3522 = vshrl.u32 %v3521, 7
        %v3523 = vsub.s32 0, %v3522
        %v3524 = vrot.slane %v3246, %v3523
        %v3525 = vlaneseq
        %v3526 = vshrl.u32 %v3525, 7
        %v3527 = vsub.s32 0, %v3526
        %v3528 = vrot.slane %v3247, %v3527
        %v3529 = vlaneseq
        %v3530 = vshrl.u32 %v3529, 7
        %v3531 = vsub.s32 0, %v3530
        %v3532 = vrot.slane %v3248, %v3531
        %v3533 = vlaneseq
        %v3534 = vshrl.u32 %v3533, 7
        %v3535 = vsub.s32 0, %v3534
        %v3536 = vrot.slane %v3249, %v3535
        %v3537 = vlaneseq
        %v3538 = vshrl.u32 %v3537, 7
        %v3539 = vsub.s32 0, %v3538
        %v3540 = vrot.slane %v3250, %v3539
        %v3541 = vlaneseq
        %v3542 = vshrl.u32 %v3541, 7
        %v3543 = vsub.s32 0, %v3542
        %v3544 = vrot.slane %v3251, %v3543
        %v3545 = vlaneseq
        %v3546 = vshrl.u32 %v3545, 7
        %v3547 = vsub.s32 0, %v3546
        %v3548 = vrot.slane %v3252, %v3547
        %v3549 = vlaneseq
        %v3550 = vshrl.u32 %v3549, 7
        %v3551 = vsub.s32 0, %v3550
        %v3552 = vrot.slane %v3253, %v3551
        %v3553 = vlaneseq
        %v3554 = vshrl.u32 %v3553, 7
        %v3555 = vsub.s32 0, %v3554
        %v3556 = vrot.slane %v3254, %v3555
        %v3557 = vlaneseq
        %v3558 = vshrl.u32 %v3557, 7
        %v3559 = vsub.s32 0, %v3558
        %v3560 = vrot.slane %v3255, %v3559
        %v3561 = vlaneseq
        %v3562 = vshrl.u32 %v3561, 7
        %v3563 = vsub.s32 0, %v3562
        %v3564 = vrot.slane %v3256, %v3563
        %v3565 = vlaneseq
        %v3566 = vshrl.u32 %v3565, 7
        %v3567 = vsub.s32 0, %v3566
        %v3568 = vrot.slane %v3257, %v3567
        %v3569 = vlaneseq
        %v3570 = vshrl.u32 %v3569, 7
        %v3571 = vsub.s32 0, %v3570
        %v3572 = vrot.slane %v3258, %v3571
        %v3573 = vlaneseq
        %v3574 = vshrl.u32 %v3573, 7
        %v3575 = vsub.s32 0, %v3574
        %v3576 = vrot.slane %v3259, %v3575
        %v3577 = vlaneseq
        %v3578 = vshrl.u32 %v3577, 7
        %v3579 = vsub.s32 0, %v3578
        %v3580 = vrot.slane %v3260, %v3579
        %vm3581 = vcmask 1041409
        %v3582 = vsel %vm3581, %v3332, %v3328
        %vm3583 = vcmask 1042434
        %v3584 = vsel %vm3583, %v3336, %v3582
        %vm3585 = vcmask 1043459
        %v3586 = vsel %vm3585, %v3340, %v3584
        %vm3587 = vcmask 1044484
        %v3588 = vsel %vm3587, %v3344, %v3586
        %vm3589 = vcmask 1045509
        %v3590 = vsel %vm3589, %v3348, %v3588
        %vm3591 = vcmask 1046534
        %v3592 = vsel %vm3591, %v3352, %v3590
        %vm3593 = vcmask 1047559
        %v3594 = vsel %vm3593, %v3356, %v3592
        %v3595 = vsel %vm3581, %v3364, %v3360
        %v3596 = vsel %vm3583, %v3368, %v3595
        %v3597 = vsel %vm3585, %v3372, %v3596
        %v3598 = vsel %vm3587, %v3376, %v3597
        %v3599 = vsel %vm3589, %v3380, %v3598
        %v3600 = vsel %vm3591, %v3384, %v3599
        %v3601 = vsel %vm3593, %v3388, %v3600
        %v3602 = vsel %vm3581, %v3396, %v3392
        %v3603 = vsel %vm3583, %v3400, %v3602
        %v3604 = vsel %vm3585, %v3404, %v3603
        %v3605 = vsel %vm3587, %v3408, %v3604
        %v3606 = vsel %vm3589, %v3412, %v3605
        %v3607 = vsel %vm3591, %v3416, %v3606
        %v3608 = vsel %vm3593, %v3420, %v3607
        %v3609 = vsel %vm3581, %v3428, %v3424
        %v3610 = vsel %vm3583, %v3432, %v3609
        %v3611 = vsel %vm3585, %v3436, %v3610
        %v3612 = vsel %vm3587, %v3440, %v3611
        %v3613 = vsel %vm3589, %v3444, %v3612
        %v3614 = vsel %vm3591, %v3448, %v3613
        %v3615 = vsel %vm3593, %v3452, %v3614
        %v3616 = vsel %vm3581, %v3460, %v3456
        %v3617 = vsel %vm3583, %v3464, %v3616
        %v3618 = vsel %vm3585, %v3468, %v3617
        %v3619 = vsel %vm3587, %v3472, %v3618
        %v3620 = vsel %vm3589, %v3476, %v3619
        %v3621 = vsel %vm3591, %v3480, %v3620
        %v3622 = vsel %vm3593, %v3484, %v3621
        %v3623 = vsel %vm3581, %v3492, %v3488
        %v3624 = vsel %vm3583, %v3496, %v3623
        %v3625 = vsel %vm3585, %v3500, %v3624
        %v3626 = vsel %vm3587, %v3504, %v3625
        %v3627 = vsel %vm3589, %v3508, %v3626
        %v3628 = vsel %vm3591, %v3512, %v3627
        %v3629 = vsel %vm3593, %v3516, %v3628
        %v3630 = vsel %vm3581, %v3524, %v3520
        %v3631 = vsel %vm3583, %v3528, %v3630
        %v3632 = vsel %vm3585, %v3532, %v3631
        %v3633 = vsel %vm3587, %v3536, %v3632
        %v3634 = vsel %vm3589, %v3540, %v3633
        %v3635 = vsel %vm3591, %v3544, %v3634
        %v3636 = vsel %vm3593, %v3548, %v3635
        %v3637 = vsel %vm3581, %v3556, %v3552
        %v3638 = vsel %vm3583, %v3560, %v3637
        %v3639 = vsel %vm3585, %v3564, %v3638
        %v3640 = vsel %vm3587, %v3568, %v3639
        %v3641 = vsel %vm3589, %v3572, %v3640
        %v3642 = vsel %vm3591, %v3576, %v3641
        %v3643 = vsel %vm3593, %v3580, %v3642
        %3652 = vst [vmem:[%s163] sm:$0xff] %v3594
        %3653 = vst [vmem:[%s163 + $0x8] sm:$0xff] %v3601
        %3654 = vst [vmem:[%s163 + $0x10] sm:$0xff] %v3608
        %3655 = vst [vmem:[%s163 + $0x18] sm:$0xff] %v3615
        %3656 = vst [vmem:[%s163 + $0x20] sm:$0xff] %v3622
        %3657 = vst [vmem:[%s163 + $0x28] sm:$0xff] %v3629
        %3658 = vst [vmem:[%s163 + $0x30] sm:$0xff] %v3636
        %3659 = vst [vmem:[%s163 + $0x38] sm:$0xff] %v3643
        %s3660 = sand.u32 %s93, 1
        %s3661 = scalar_lea.sflag [#allocation4], %s3660
        %s3662 = sand.u32 %s93, 1
        %s3663 = smul.addr %s3662, 64
        %s3664 = scalar_lea.vmem [#allocation3], %s3663
        // Predicated region
        $region33: #{tpu_custom_call.1} parent=31 // pred_check
          %p3665 = pneg %p103
        $region34: #{tpu_custom_call.1} parent=31 // pred_check_branch
          %3667 = sbr.rel (%p3665) target = $region36
        $region35: #{tpu_custom_call.1} parent=31 // pred_region
          %s3669 = ssub.s32 1024, 1024
          %3670 = vsyncadd %s3661, %s3669
          %s3671 = smul.addr %s17, 8
          %s3672 = smul.addr %s3671, 128
          %s3673 = scalar_lea.hbm %s3, %s3672
          %s3674 = sshll.u32 %s3664, 4
          %s3675 = int_to_ptr.vmem [resolvable:$true] %s3674
          %3680 = dma.vmem_to_hbm [thread:$0]  %s3675, 1024, %s3673, %s3661, 128, 128, 8
        $region36: #{tpu_custom_call.1} parent=31 // pred_fallthru
          _
      $region32: #{tpu_custom_call.1} parent=5 // pred_fallthru
        _
      %p3681 = scmp.le.s32.totalorder 2, %s12
      // Predicated region
      $region37: #{tpu_custom_call.1} parent=5 // pred_check
        %p3682 = pneg %p3681
      $region38: #{tpu_custom_call.1} parent=5 // pred_check_branch
        %3684 = sbr.rel (%p3682) target = $region40
      $region39: #{tpu_custom_call.1} parent=5 // pred_region
        %s3685 = ssub.s32 %s12, 2
        // Predicated region
        $region41: #{tpu_custom_call.1} parent=39 // pred_check
          %p3686 = pneg %p109
        $region42: #{tpu_custom_call.1} parent=39 // pred_check_branch
          %3688 = sbr.rel (%p3686) target = $region44
        $region43: #{tpu_custom_call.1} parent=39 // pred_region
          %s3689 = sand.u32 %s94, 1
          %s3690 = scalar_lea.sflag [#allocation4], %s3689
          %s3691 = sand.u32 %s94, 1
          %s3692 = smul.addr %s3691, 64
          %s3693 = scalar_lea.vmem [#allocation3], %s3692
          %3694 = dma.done %s3690, 1024
        $region44: #{tpu_custom_call.1} parent=39 // pred_fallthru
          _
      $region40: #{tpu_custom_call.1} parent=5 // pred_fallthru
        _
    $region6: #{tpu_custom_call.1} parent=1 // loop_footer
      %s16 = sadd.s32 1, %s12
    $region7: #{tpu_custom_call.1} parent=1 // loop_footer_branch
      %11 = sbr.rel target = $region3
    $region8: #{tpu_custom_call.1} parent=1 // loop_exit
      _
    %3695 = vsyncpa [#allocation4], 1
    %s3696 = scalar_lea.sflag [#allocation4], 1
    %3697 = vsyncpa %s3696, 1

</llo_original>
